<compile_context>
chip_gen: v6e
topology: v6e:2x2x1
jax: 0.10.0
libtpu: 0.0.40
codegen_flags: <defaults>
</compile_context>

<pallas_src>
import jax
import jax.numpy as jnp
from jax.experimental import pallas as pl
from jax.experimental.pallas import tpu as pltpu


_H = 512                      # hidden width of the Disc MLP
_VMEM_TILE_BUDGET = 16 << 20  # target bytes of pipelined blocks + scratch
_VMEM_LIMIT = 32 << 20        # scoped-VMEM limit: safe on v5e / v6e / v7x


def _round_up(n, m):
    return ((n + m - 1) // m) * m


def _cdiv(a, b):
    return -(-a // b)


def _disc_kernel(x_ref, w1_ref, b1_ref, w2_ref, b2_ref, o_ref, acc_ref):
    # x:  (TB, TK) f32     w1: (TK, 512) bf16    b1: (1, 512) f32
    # w2: (512, 8) bf16 (col 0 = real weights)   b2: (1, 1)   f32
    # o:  (TB, 8)  f32 (column 0 is the real output)
    # acc:(TB, 512) f32 scratch accumulator
    k = pl.program_id(1)

    @pl.when(k == 0)
    def _():
        acc_ref[...] = jnp.zeros_like(acc_ref)

    # ---- Layer 1 partial product: in-kernel f32->bf16 cast, MXU, f32 acc ----
    acc_ref[...] += jnp.dot(x_ref[...].astype(jnp.bfloat16), w1_ref[...],
                            preferred_element_type=jnp.float32)

    @pl.when(k == pl.num_programs(1) - 1)
    def _():
        h = acc_ref[...] + b1_ref[...]            # (TB, 512) f32
        h = jnp.maximum(h, 0.2 * h)               # LeakyReLU(0.2)
        # ---- Layer 2: (TB, 512) @ (512, 8) bf16 MXU, f32 accumulate ----
        y = jnp.dot(h.astype(jnp.bfloat16), w2_ref[...],
                    preferred_element_type=jnp.float32)
        y = y + b2_ref[...]                       # broadcast (1, 1) -> (TB, 8)
        # ---- Sigmoid: EUP exp + approximate EUP reciprocal ----
        o_ref[...] = pl.reciprocal(1.0 + jnp.exp(-y),
                                   approx=True).astype(o_ref.dtype)


def _choose_tiles(B, F):
    """Pick (TB, TK, num_k_tiles, F_pad) bounded by the VMEM budget."""
    # Batch tile: multiple of 8 (f32 sublane), capped to bound the accumulator;
    # prefer >= 2 batch tiles for moderate B so the "parallel" axis actually
    # shards across v7x's two TensorCores.
    TB = min(1024, _round_up(B, 8))
    if B > 256 and _cdiv(B, TB) < 2:
        TB = _round_up(_cdiv(B, 2), 8)

    # K (reduction) tile: multiple of 128, sized so double-buffered x (f32),
    # double-buffered w1 (bf16), the accumulator and the small residents all
    # fit the budget on every generation.
    acc_bytes = TB * _H * 4
    out_bytes = 2 * TB * 8 * 4
    resident_bytes = 2 * (_H * 4 + _H * 8 * 2 + 4)        # b1, w2, b2
    per_tk_bytes = 2 * TB * 4 + 2 * _H * 2                # x (x2) + w1 (x2)
    avail = max(_VMEM_TILE_BUDGET - acc_bytes - out_bytes - resident_bytes,
                128 * per_tk_bytes)
    tk_max = max(128, (avail // per_tk_bytes) // 128 * 128)

    # Split F as evenly as possible into 128-multiple tiles (minimal padding).
    F128 = _round_up(F, 128)
    nk = _cdiv(F128, tk_max)
    TK = _round_up(_cdiv(F128, nk), 128)
    return TB, TK, nk, nk * TK


def disc_forward(net_nchw, w1, b1, w2, b2):
    """net_nchw: (B, 512-sep, size, size) f32 -> (B,) f32 (sigmoid probs)."""
    B = net_nchw.shape[0]
    F = net_nchw.shape[1] * net_nchw.shape[2] * net_nchw.shape[3]
    H = w1.shape[1]  # 512
    x = net_nchw.reshape(B, F)  # same semantics as torch .view on NCHW

    TB, TK, nk, F_pad = _choose_tiles(B, F)
    nb = _cdiv(B, TB)
    B_pad = nb * TB

    # Zero-pad only when needed (padded rows/cols contribute 0 to the matmul
    # and are sliced off / ignored afterwards).
    if B_pad != B or F_pad != F:
        x = jnp.pad(x, ((0, B_pad - B), (0, F_pad - F)))
    # NOTE: x stays f32 in HBM; the bf16 cast happens inside the kernel.

    w1_bf16 = w1.astype(jnp.bfloat16)
    if F_pad != F:
        w1_bf16 = jnp.pad(w1_bf16, ((0, F_pad - F), (0, 0)))
    b1_2d = b1.reshape(1, H).astype(jnp.float32)
    # Pad w2 (H, 1) -> (H, 8): real weights in column 0, zeros elsewhere.
    w2_pad = jnp.zeros((H, 8), jnp.float32).at[:, 0].set(
        w2.reshape(H)).astype(jnp.bfloat16)
    b2_2d = b2.reshape(1, 1).astype(jnp.float32)

    flops = 2 * B_pad * F_pad * H + 2 * B_pad * H * 8
    bytes_accessed = (B_pad * F_pad * 4          # x (f32, read once)
                      + nb * F_pad * H * 2       # w1 (bf16, re-read per batch tile)
                      + H * 4 + H * 8 * 2 + 4    # b1, w2, b2
                      + B_pad * 8 * 4)           # output

    out = pl.pallas_call(
        _disc_kernel,
        out_shape=jax.ShapeDtypeStruct((B_pad, 8), jnp.float32),
        grid=(nb, nk),
        in_specs=[
            pl.BlockSpec((TB, TK), lambda i, k: (i, k)),   # x: batch x K tiles
            pl.BlockSpec((TK, H), lambda i, k: (k, 0)),    # w1: K tiles
            pl.BlockSpec((1, H), lambda i, k: (0, 0)),     # b1: resident
            pl.BlockSpec((H, 8), lambda i, k: (0, 0)),     # w2 (padded): resident
            pl.BlockSpec((1, 1), lambda i, k: (0, 0)),     # b2: resident
        ],
        out_specs=pl.BlockSpec((TB, 8), lambda i, k: (i, 0)),
        scratch_shapes=[pltpu.VMEM((TB, H), jnp.float32)],
        compiler_params=pltpu.CompilerParams(
            dimension_semantics=("parallel", "arbitrary"),
            vmem_limit_bytes=_VMEM_LIMIT),
        cost_estimate=pl.CostEstimate(
            flops=flops,
            transcendentals=2 * 8 * B_pad,
            bytes_accessed=bytes_accessed),
    )(x, w1_bf16, b1_2d, w2_pad, b2_2d)

    # Column 0 holds the real per-sample output; padded rows are dropped.
    return out[:B, 0]  # torch .view(-1)


def init_disc_params(key, sep, size, hidden=512):
    """Deterministic init mirroring nn.Linear shapes (uniform +/- 1/sqrt(fan_in))."""
    F = (512 - sep) * size * size
    k1, k2, k3, k4 = jax.random.split(key, 4)
    lim1 = 1.0 / jnp.sqrt(F)
    lim2 = 1.0 / jnp.sqrt(hidden)
    w1 = jax.random.uniform(k1, (F, hidden), jnp.float32, -lim1, lim1)
    b1 = jax.random.uniform(k2, (hidden,), jnp.float32, -lim1, lim1)
    w2 = jax.random.uniform(k3, (hidden, 1), jnp.float32, -lim2, lim2)
    b2 = jax.random.uniform(k4, (1,), jnp.float32, -lim2, lim2)
    return w1, b1, w2, b2


def reference_forward(net_nchw, w1, b1, w2, b2, emulate_bf16=False):
    B = net_nchw.shape[0]
    x = net_nchw.reshape(B, -1)
    if emulate_bf16:
        x = x.astype(jnp.bfloat16).astype(jnp.float32)
        w1 = w1.astype(jnp.bfloat16).astype(jnp.float32)
    h = x @ w1 + b1
    h = jnp.where(h > 0, h, 0.2 * h)
    y = h @ w2 + b2
    return jax.nn.sigmoid(y).reshape(-1)


if __name__ == "__main__":
    # Small shapes: sep=448, size=4 -> channels = 512-448 = 64, F = 64*4*4 = 1024
    sep, size = 448, 4
    B = 2
    C = 512 - sep

    key = jax.random.PRNGKey(0)
    kx, kp = jax.random.split(key)
    net = jax.random.normal(kx, (B, C, size, size), jnp.float32)
    w1, b1, w2, b2 = init_disc_params(kp, sep, size)

    out = disc_forward(net, w1, b1, w2, b2)
    out = jax.block_until_ready(out)
    assert out.shape == (B,)

    # Tight check against a reference that mirrors the kernel's bf16 layer-1 inputs.
    ref_bf16 = reference_forward(net, w1, b1, w2, b2, emulate_bf16=True)
    assert jnp.allclose(out, ref_bf16, atol=1e-2, rtol=1e-2), (out, ref_bf16)

    # Semantic check against the pure-f32 PyTorch-equivalent forward
    # (looser: layer-1/2 matmul operands are rounded to bf16 inside the kernel).
    ref_f32 = reference_forward(net, w1, b1, w2, b2)
    assert jnp.allclose(out, ref_f32, atol=2e-2, rtol=2e-2), (out, ref_f32)

    print("KERNEL_OK")
</pallas_src>

<mosaic_0001>
module attributes {stable_mosaic.version = 11 : i64} {
  func.func @_disc_kernel(%arg0: i32, %arg1: i32, %arg2: memref<8x1024xf32, #tpu.memory_space<vmem>>, %arg3: memref<1024x512xbf16, #tpu.memory_space<vmem>>, %arg4: memref<1x512xf32, #tpu.memory_space<vmem>>, %arg5: memref<512x8xbf16, #tpu.memory_space<vmem>>, %arg6: memref<1x1xf32, #tpu.memory_space<vmem>>, %arg7: memref<8x8xf32, #tpu.memory_space<vmem>>, %arg8: memref<8x512xf32, #tpu.memory_space<vmem>>) attributes {dimension_semantics = [#tpu.dimension_semantics<parallel>, #tpu.dimension_semantics<arbitrary>], iteration_bounds = array<i64: 1, 1>, scalar_prefetch = 0 : i64, scratch_operands = 1 : i64, tpu.core_type = #tpu.core_type<tc>, window_params = [{transform_indices = @transform_0, window_bounds = array<i64: 8, 1024>}, {transform_indices = @transform_1, window_bounds = array<i64: 1024, 512>}, {pipeline_mode = #tpu.pipeline_mode<synchronous>, transform_indices = @transform_2, window_bounds = array<i64: 1, 512>}, {pipeline_mode = #tpu.pipeline_mode<synchronous>, transform_indices = @transform_3, window_bounds = array<i64: 512, 8>}, {pipeline_mode = #tpu.pipeline_mode<synchronous>, transform_indices = @transform_4, window_bounds = array<i64: 1, 1>}, {transform_indices = @transform_5, window_bounds = array<i64: 8, 8>}]} {
    %c0_i32 = arith.constant 0 : i32
    %0 = arith.cmpi eq, %arg1, %c0_i32 : i32
    %1 = arith.extui %0 : i1 to i32
    %c0_i32_0 = arith.constant 0 : i32
    %2 = arith.cmpi ne, %1, %c0_i32_0 : i32
    scf.if %2 {
      %cst_10 = arith.constant 0.000000e+00 : f32
      %13 = vector.broadcast %cst_10 : f32 to vector<8x512xf32>
      %c0_11 = arith.constant 0 : index
      %c0_12 = arith.constant 0 : index
      %14 = vector.load %arg8[%c0_11, %c0_12] : memref<8x512xf32, #tpu.memory_space<vmem>>, vector<8x512xf32>
      tpu.vector_store %arg8[%c0_11, %c0_12], %13 {strides = array<i32>} : memref<8x512xf32, #tpu.memory_space<vmem>>, vector<8x512xf32>,
    } else {
    }
    %c0 = arith.constant 0 : index
    %c0_1 = arith.constant 0 : index
    %3 = vector.load %arg8[%c0, %c0_1] : memref<8x512xf32, #tpu.memory_space<vmem>>, vector<8x512xf32>
    %c0_2 = arith.constant 0 : index
    %c0_3 = arith.constant 0 : index
    %4 = vector.load %arg2[%c0_2, %c0_3] : memref<8x1024xf32, #tpu.memory_space<vmem>>, vector<8x1024xf32>
    %5 = arith.truncf %4 : vector<8x1024xf32> to vector<8x1024xbf16>
    %c0_4 = arith.constant 0 : index
    %c0_5 = arith.constant 0 : index
    %6 = vector.load %arg3[%c0_4, %c0_5] : memref<1024x512xbf16, #tpu.memory_space<vmem>>, vector<1024x512xbf16>
    %cst = arith.constant dense<0.000000e+00> : vector<8x512xf32>
    %7 = tpu.matmul %5, %6, %cst {dimension_numbers = #tpu.dot_dimension_numbers<[1], [0], [0], [1], [0, 0, 1, 1], [], []>} : vector<8x1024xbf16>, vector<1024x512xbf16>, vector<8x512xf32> -> vector<8x512xf32>
    %8 = arith.addf %3, %7 : vector<8x512xf32>
    %c0_6 = arith.constant 0 : index
    %c0_7 = arith.constant 0 : index
    %9 = vector.load %arg8[%c0_6, %c0_7] : memref<8x512xf32, #tpu.memory_space<vmem>>, vector<8x512xf32>
    tpu.vector_store %arg8[%c0_6, %c0_7], %8 {strides = array<i32>} : memref<8x512xf32, #tpu.memory_space<vmem>>, vector<8x512xf32>,
    %c0_i32_8 = arith.constant 0 : i32
    %10 = arith.cmpi eq, %arg1, %c0_i32_8 : i32
    %11 = arith.extui %10 : i1 to i32
    %c0_i32_9 = arith.constant 0 : i32
    %12 = arith.cmpi ne, %11, %c0_i32_9 : i32
    scf.if %12 {
      %c0_10 = arith.constant 0 : index
      %c0_11 = arith.constant 0 : index
      %13 = vector.load %arg8[%c0_10, %c0_11] : memref<8x512xf32, #tpu.memory_space<vmem>>, vector<8x512xf32>
      %c0_12 = arith.constant 0 : index
      %c0_13 = arith.constant 0 : index
      %14 = vector.load %arg4[%c0_12, %c0_13] : memref<1x512xf32, #tpu.memory_space<vmem>>, vector<1x512xf32>
      %15 = vector.broadcast %14 : vector<1x512xf32> to vector<8x512xf32>
      %16 = arith.addf %13, %15 : vector<8x512xf32>
      %cst_14 = arith.constant 2.000000e-01 : f32
      %17 = vector.broadcast %cst_14 : f32 to vector<8x512xf32>
      %18 = arith.mulf %17, %16 : vector<8x512xf32>
      %19 = arith.maximumf %16, %18 : vector<8x512xf32>
      %20 = arith.truncf %19 : vector<8x512xf32> to vector<8x512xbf16>
      %c0_15 = arith.constant 0 : index
      %c0_16 = arith.constant 0 : index
      %21 = vector.load %arg5[%c0_15, %c0_16] : memref<512x8xbf16, #tpu.memory_space<vmem>>, vector<512x8xbf16>
      %cst_17 = arith.constant dense<0.000000e+00> : vector<8x8xf32>
      %22 = tpu.matmul %20, %21, %cst_17 {dimension_numbers = #tpu.dot_dimension_numbers<[1], [0], [0], [1], [0, 0, 1, 1], [], []>} : vector<8x512xbf16>, vector<512x8xbf16>, vector<8x8xf32> -> vector<8x8xf32>
      %c0_18 = arith.constant 0 : index
      %c0_19 = arith.constant 0 : index
      %23 = vector.load %arg6[%c0_18, %c0_19] : memref<1x1xf32, #tpu.memory_space<vmem>>, vector<1x1xf32>
      %24 = vector.broadcast %23 : vector<1x1xf32> to vector<8x8xf32>
      %25 = arith.addf %22, %24 : vector<8x8xf32>
      %cst_20 = arith.constant 0.000000e+00 : f32
      %26 = vector.broadcast %cst_20 : f32 to vector<8x8xf32>
      %27 = arith.subf %26, %25 : vector<8x8xf32>
      %28 = math.exp %27 : vector<8x8xf32>
      %cst_21 = arith.constant 1.000000e+00 : f32
      %29 = vector.broadcast %cst_21 : f32 to vector<8x8xf32>
      %30 = arith.addf %29, %28 : vector<8x8xf32>
      %31 = tpu.reciprocal %30 {approx = true} : vector<8x8xf32> -> vector<8x8xf32>
      %c0_22 = arith.constant 0 : index
      %c0_23 = arith.constant 0 : index
      %32 = vector.load %arg7[%c0_22, %c0_23] : memref<8x8xf32, #tpu.memory_space<vmem>>, vector<8x8xf32>
      tpu.vector_store %arg7[%c0_22, %c0_23], %31 {strides = array<i32>} : memref<8x8xf32, #tpu.memory_space<vmem>>, vector<8x8xf32>,
    } else {
    }
    return
  }
  func.func @transform_0(%arg0: i32, %arg1: i32) -> (i32, i32) {
    %c0_i32 = arith.constant 0 : i32
    return %arg0, %arg1 : i32, i32
  }
  func.func @transform_1(%arg0: i32, %arg1: i32) -> (i32, i32) {
    %c0_i32 = arith.constant 0 : i32
    %c0_i32_0 = arith.constant 0 : i32
    return %arg1, %c0_i32 : i32, i32
  }
  func.func @transform_2(%arg0: i32, %arg1: i32) -> (i32, i32) {
    %c0_i32 = arith.constant 0 : i32
    %c0_i32_0 = arith.constant 0 : i32
    %c0_i32_1 = arith.constant 0 : i32
    return %c0_i32, %c0_i32_0 : i32, i32
  }
  func.func @transform_3(%arg0: i32, %arg1: i32) -> (i32, i32) {
    %c0_i32 = arith.constant 0 : i32
    %c0_i32_0 = arith.constant 0 : i32
    %c0_i32_1 = arith.constant 0 : i32
    return %c0_i32, %c0_i32_0 : i32, i32
  }
  func.func @transform_4(%arg0: i32, %arg1: i32) -> (i32, i32) {
    %c0_i32 = arith.constant 0 : i32
    %c0_i32_0 = arith.constant 0 : i32
    %c0_i32_1 = arith.constant 0 : i32
    return %c0_i32, %c0_i32_0 : i32, i32
  }
  func.func @transform_5(%arg0: i32, %arg1: i32) -> (i32, i32) {
    %c0_i32 = arith.constant 0 : i32
    %c0_i32_0 = arith.constant 0 : i32
    return %arg0, %c0_i32 : i32, i32
  }
}

</mosaic_0001>

<llo_original>
// kernel: tpu_custom_call.1
$region0: #{tpu_custom_call.1}
  #allocation0 [shape = 'u32[]', space=smem, size = 0x4, offset = 0x4, fixed_abs, tag = 'smem constant byte address 0x4 - core index']
  #allocation1 [shape = 'u32[144,128]{1,0:T(1,128)}', space=vmem, size = 0x12000, scoped, tag = 'internal scratch']
  #allocation2 [shape = 'f32[8,512]{1,0:T(8,128)}', space=vmem, size = 0x4000, scoped, tag = 'scratch operand']
  #allocation3 [shape = 'f32[1,1]{1,0:T(1,128)S(1)}', space=vmem, size = 0x200, scoped, tag = 'scoped memory for tpu_custom_call.1']
  %s0 = inlined_call_operand.vmem [shape: f32[8,1024], index: 0, kind: input, shape index: {}]
  %s1 = inlined_call_operand.hbm [shape: bf16[1024,512], index: 1, kind: input, shape index: {}]
  %s2 = inlined_call_operand.vmem [shape: f32[1,512], index: 2, kind: input, shape index: {}]
  %s3 = inlined_call_operand.vmem [shape: bf16[512,8], index: 3, kind: input, shape index: {}]
  %s4 = inlined_call_operand.<no memory space> [shape: f32[1,1], index: 4, kind: input, shape index: {}]
  %s5 = inlined_call_operand.hbm [shape: f32[8,8], index: 5, kind: output, shape index: {}]
  %s6 = sld [smem:[#allocation0]]
  $region42: #{tpu_custom_call.1} parent=0
    _
  %s8 = ssub.s32 1, %s6
  %s9 = scalar_select 0, %s8, %s6
  %v10 = vstv %s4
  %11 = vst [vmem:[#allocation3] sm:$0x1] %v10
  $region1: #{tpu_custom_call.1} parent=0
    #allocation4 [shape = 'u8[1048576]{0}', space=vmem, size = 0x100000, scoped, tag = 'input window, operand 1, single buffered']
    #allocation5 [shape = 's32[1]{0}', space=sflag, size = 0x4, scoped, tag = 'scoped memory for tpu_custom_call.1']
    #allocation6 [shape = 's32[1]{0}', space=sflag, size = 0x4, scoped, tag = 'scoped memory for tpu_custom_call.1']
    #allocation7 [shape = 'u8[4096]{0}', space=vmem, size = 0x1000, scoped, tag = 'output window, operand 0, single buffered']
    %12 = vsyncpa [#allocation5], 0
    %13 = vsyncpa [#allocation6], 0
    // Predicated region
    $region2: #{tpu_custom_call.1} parent=1 // pred_check
      _
    $region3: #{tpu_custom_call.1} parent=1 // pred_check_branch
      %15 = sbr.rel (0) target = $region5
    $region4: #{tpu_custom_call.1} parent=1 // pred_region
      _
    $region5: #{tpu_custom_call.1} parent=1 // pred_fallthru
      _
    // Predicated region
    $region6: #{tpu_custom_call.1} parent=1 // pred_check
      _
    $region7: #{tpu_custom_call.1} parent=1 // pred_check_branch
      %17 = sbr.rel (0) target = $region9
    $region8: #{tpu_custom_call.1} parent=1 // pred_region
      %s19 = ssub.s32 32768, 32768
      %20 = vsyncadd [#allocation5], %s19
      %s21 = sshll.u32 [#allocation4], 4
      %s22 = int_to_ptr.vmem [resolvable:$true] %s21
      %27 = dma.hbm_to_vmem [thread:$0]  %s1, 32768, %s22, [#allocation5], 256, 256, 16
    $region9: #{tpu_custom_call.1} parent=1 // pred_fallthru
      _
    // Predicated region
    $region10: #{tpu_custom_call.1} parent=1 // pred_check
      _
    $region11: #{tpu_custom_call.1} parent=1 // pred_check_branch
      %29 = sbr.rel (0) target = $region13
    $region12: #{tpu_custom_call.1} parent=1 // pred_region
      _
    $region13: #{tpu_custom_call.1} parent=1 // pred_fallthru
      _
    // Predicated region
    $region14: #{tpu_custom_call.1} parent=1 // pred_check
      _
    $region15: #{tpu_custom_call.1} parent=1 // pred_check_branch
      %31 = sbr.rel (0) target = $region17
    $region16: #{tpu_custom_call.1} parent=1 // pred_region
      _
    $region17: #{tpu_custom_call.1} parent=1 // pred_fallthru
      _
    // Predicated region
    $region18: #{tpu_custom_call.1} parent=1 // pred_check
      _
    $region19: #{tpu_custom_call.1} parent=1 // pred_check_branch
      %33 = sbr.rel (0) target = $region21
    $region20: #{tpu_custom_call.1} parent=1 // pred_region
      _
    $region21: #{tpu_custom_call.1} parent=1 // pred_fallthru
      _
    // Predicated region
    $region22: #{tpu_custom_call.1} parent=1 // pred_check
      _
    $region23: #{tpu_custom_call.1} parent=1 // pred_check_branch
      %35 = sbr.rel (0) target = $region25
    $region24: #{tpu_custom_call.1} parent=1 // pred_region
      %36 = dma.done [#allocation5], 32768
    $region25: #{tpu_custom_call.1} parent=1 // pred_fallthru
      _
    %p38 = scmp.eq.s32.totalorder 0, 0
    // Predicated region
    $region26: #{tpu_custom_call.1} parent=1 // pred_check
      %p39 = pneg %p38
    $region27: #{tpu_custom_call.1} parent=1 // pred_check_branch
      %41 = sbr.rel (%p39) target = $region29
    $region28: #{tpu_custom_call.1} parent=1 // pred_region
      %42 = vst [vmem:[#allocation2] sm:$0xff] 0.0
      %43 = vst [vmem:[#allocation2 + $0x8] sm:$0xff] 0.0
      %44 = vst [vmem:[#allocation2 + $0x10] sm:$0xff] 0.0
      %45 = vst [vmem:[#allocation2 + $0x18] sm:$0xff] 0.0
    $region29: #{tpu_custom_call.1} parent=1 // pred_fallthru
      _
    %v46 = vld [vmem:[#allocation2] sm:$0xff]
    %v47 = vld [vmem:[#allocation2 + $0x8] sm:$0xff]
    %v48 = vld [vmem:[#allocation2 + $0x10] sm:$0xff]
    %v49 = vld [vmem:[#allocation2 + $0x18] sm:$0xff]
    %v50 = vld [vmem:[%s0] sm:$0xff]
    %v51 = vld [vmem:[%s0 + $0x8] sm:$0xff]
    %v52 = vld [vmem:[%s0 + $0x10] sm:$0xff]
    %v53 = vld [vmem:[%s0 + $0x18] sm:$0xff]
    %v54 = vld [vmem:[%s0 + $0x20] sm:$0xff]
    %v55 = vld [vmem:[%s0 + $0x28] sm:$0xff]
    %v56 = vld [vmem:[%s0 + $0x30] sm:$0xff]
    %v57 = vld [vmem:[%s0 + $0x38] sm:$0xff]
    %v58 = vpack.c.bf16 %v50, %v50
    %v59 = vpack.c.bf16 %v51, %v51
    %v60 = vpack.c.bf16 %v52, %v52
    %v61 = vpack.c.bf16 %v53, %v53
    %v62 = vpack.c.bf16 %v54, %v54
    %v63 = vpack.c.bf16 %v55, %v55
    %v64 = vpack.c.bf16 %v56, %v56
    %v65 = vpack.c.bf16 %v57, %v57
    %v66 = vld [vmem:[#allocation4] sm:$0xff]
    %v67 = vld [vmem:[#allocation4 + $0x8] sm:$0xff]
    %v68 = vld [vmem:[#allocation4 + $0x10] sm:$0xff]
    %v69 = vld [vmem:[#allocation4 + $0x18] sm:$0xff]
    %v70 = vld [vmem:[#allocation4 + $0x20] sm:$0xff]
    %v71 = vld [vmem:[#allocation4 + $0x28] sm:$0xff]
    %v72 = vld [vmem:[#allocation4 + $0x30] sm:$0xff]
    %v73 = vld [vmem:[#allocation4 + $0x38] sm:$0xff]
    %v74 = vld [vmem:[#allocation4 + $0x40] sm:$0xff]
    %v75 = vld [vmem:[#allocation4 + $0x48] sm:$0xff]
    %v76 = vld [vmem:[#allocation4 + $0x50] sm:$0xff]
    %v77 = vld [vmem:[#allocation4 + $0x58] sm:$0xff]
    %v78 = vld [vmem:[#allocation4 + $0x60] sm:$0xff]
    %v79 = vld [vmem:[#allocation4 + $0x68] sm:$0xff]
    %v80 = vld [vmem:[#allocation4 + $0x70] sm:$0xff]
    %v81 = vld [vmem:[#allocation4 + $0x78] sm:$0xff]
    %v82 = vld [vmem:[#allocation4 + $0x80] sm:$0xff]
    %v83 = vld [vmem:[#allocation4 + $0x88] sm:$0xff]
    %v84 = vld [vmem:[#allocation4 + $0x90] sm:$0xff]
    %v85 = vld [vmem:[#allocation4 + $0x98] sm:$0xff]
    %v86 = vld [vmem:[#allocation4 + $0xa0] sm:$0xff]
    %v87 = vld [vmem:[#allocation4 + $0xa8] sm:$0xff]
    %v88 = vld [vmem:[#allocation4 + $0xb0] sm:$0xff]
    %v89 = vld [vmem:[#allocation4 + $0xb8] sm:$0xff]
    %v90 = vld [vmem:[#allocation4 + $0xc0] sm:$0xff]
    %v91 = vld [vmem:[#allocation4 + $0xc8] sm:$0xff]
    %v92 = vld [vmem:[#allocation4 + $0xd0] sm:$0xff]
    %v93 = vld [vmem:[#allocation4 + $0xd8] sm:$0xff]
    %v94 = vld [vmem:[#allocation4 + $0xe0] sm:$0xff]
    %v95 = vld [vmem:[#allocation4 + $0xe8] sm:$0xff]
    %v96 = vld [vmem:[#allocation4 + $0xf0] sm:$0xff]
    %v97 = vld [vmem:[#allocation4 + $0xf8] sm:$0xff]
    %v98 = vld [vmem:[#allocation4 + $0x100] sm:$0xff]
    %v99 = vld [vmem:[#allocation4 + $0x108] sm:$0xff]
    %v100 = vld [vmem:[#allocation4 + $0x110] sm:$0xff]
    %v101 = vld [vmem:[#allocation4 + $0x118] sm:$0xff]
    %v102 = vld [vmem:[#allocation4 + $0x120] sm:$0xff]
    %v103 = vld [vmem:[#allocation4 + $0x128] sm:$0xff]
    %v104 = vld [vmem:[#allocation4 + $0x130] sm:$0xff]
    %v105 = vld [vmem:[#allocation4 + $0x138] sm:$0xff]
    %v106 = vld [vmem:[#allocation4 + $0x140] sm:$0xff]
    %v107 = vld [vmem:[#allocation4 + $0x148] sm:$0xff]
    %v108 = vld [vmem:[#allocation4 + $0x150] sm:$0xff]
    %v109 = vld [vmem:[#allocation4 + $0x158] sm:$0xff]
    %v110 = vld [vmem:[#allocation4 + $0x160] sm:$0xff]
    %v111 = vld [vmem:[#allocation4 + $0x168] sm:$0xff]
    %v112 = vld [vmem:[#allocation4 + $0x170] sm:$0xff]
    %v113 = vld [vmem:[#allocation4 + $0x178] sm:$0xff]
    %v114 = vld [vmem:[#allocation4 + $0x180] sm:$0xff]
    %v115 = vld [vmem:[#allocation4 + $0x188] sm:$0xff]
    %v116 = vld [vmem:[#allocation4 + $0x190] sm:$0xff]
    %v117 = vld [vmem:[#allocation4 + $0x198] sm:$0xff]
    %v118 = vld [vmem:[#allocation4 + $0x1a0] sm:$0xff]
    %v119 = vld [vmem:[#allocation4 + $0x1a8] sm:$0xff]
    %v120 = vld [vmem:[#allocation4 + $0x1b0] sm:$0xff]
    %v121 = vld [vmem:[#allocation4 + $0x1b8] sm:$0xff]
    %v122 = vld [vmem:[#allocation4 + $0x1c0] sm:$0xff]
    %v123 = vld [vmem:[#allocation4 + $0x1c8] sm:$0xff]
    %v124 = vld [vmem:[#allocation4 + $0x1d0] sm:$0xff]
    %v125 = vld [vmem:[#allocation4 + $0x1d8] sm:$0xff]
    %v126 = vld [vmem:[#allocation4 + $0x1e0] sm:$0xff]
    %v127 = vld [vmem:[#allocation4 + $0x1e8] sm:$0xff]
    %v128 = vld [vmem:[#allocation4 + $0x1f0] sm:$0xff]
    %v129 = vld [vmem:[#allocation4 + $0x1f8] sm:$0xff]
    %v130 = vld [vmem:[#allocation4 + $0x200] sm:$0xff]
    %v131 = vld [vmem:[#allocation4 + $0x208] sm:$0xff]
    %v132 = vld [vmem:[#allocation4 + $0x210] sm:$0xff]
    %v133 = vld [vmem:[#allocation4 + $0x218] sm:$0xff]
    %v134 = vld [vmem:[#allocation4 + $0x220] sm:$0xff]
    %v135 = vld [vmem:[#allocation4 + $0x228] sm:$0xff]
    %v136 = vld [vmem:[#allocation4 + $0x230] sm:$0xff]
    %v137 = vld [vmem:[#allocation4 + $0x238] sm:$0xff]
    %v138 = vld [vmem:[#allocation4 + $0x240] sm:$0xff]
    %v139 = vld [vmem:[#allocation4 + $0x248] sm:$0xff]
    %v140 = vld [vmem:[#allocation4 + $0x250] sm:$0xff]
    %v141 = vld [vmem:[#allocation4 + $0x258] sm:$0xff]
    %v142 = vld [vmem:[#allocation4 + $0x260] sm:$0xff]
    %v143 = vld [vmem:[#allocation4 + $0x268] sm:$0xff]
    %v144 = vld [vmem:[#allocation4 + $0x270] sm:$0xff]
    %v145 = vld [vmem:[#allocation4 + $0x278] sm:$0xff]
    %v146 = vld [vmem:[#allocation4 + $0x280] sm:$0xff]
    %v147 = vld [vmem:[#allocation4 + $0x288] sm:$0xff]
    %v148 = vld [vmem:[#allocation4 + $0x290] sm:$0xff]
    %v149 = vld [vmem:[#allocation4 + $0x298] sm:$0xff]
    %v150 = vld [vmem:[#allocation4 + $0x2a0] sm:$0xff]
    %v151 = vld [vmem:[#allocation4 + $0x2a8] sm:$0xff]
    %v152 = vld [vmem:[#allocation4 + $0x2b0] sm:$0xff]
    %v153 = vld [vmem:[#allocation4 + $0x2b8] sm:$0xff]
    %v154 = vld [vmem:[#allocation4 + $0x2c0] sm:$0xff]
    %v155 = vld [vmem:[#allocation4 + $0x2c8] sm:$0xff]
    %v156 = vld [vmem:[#allocation4 + $0x2d0] sm:$0xff]
    %v157 = vld [vmem:[#allocation4 + $0x2d8] sm:$0xff]
    %v158 = vld [vmem:[#allocation4 + $0x2e0] sm:$0xff]
    %v159 = vld [vmem:[#allocation4 + $0x2e8] sm:$0xff]
    %v160 = vld [vmem:[#allocation4 + $0x2f0] sm:$0xff]
    %v161 = vld [vmem:[#allocation4 + $0x2f8] sm:$0xff]
    %v162 = vld [vmem:[#allocation4 + $0x300] sm:$0xff]
    %v163 = vld [vmem:[#allocation4 + $0x308] sm:$0xff]
    %v164 = vld [vmem:[#allocation4 + $0x310] sm:$0xff]
    %v165 = vld [vmem:[#allocation4 + $0x318] sm:$0xff]
    %v166 = vld [vmem:[#allocation4 + $0x320] sm:$0xff]
    %v167 = vld [vmem:[#allocation4 + $0x328] sm:$0xff]
    %v168 = vld [vmem:[#allocation4 + $0x330] sm:$0xff]
    %v169 = vld [vmem:[#allocation4 + $0x338] sm:$0xff]
    %v170 = vld [vmem:[#allocation4 + $0x340] sm:$0xff]
    %v171 = vld [vmem:[#allocation4 + $0x348] sm:$0xff]
    %v172 = vld [vmem:[#allocation4 + $0x350] sm:$0xff]
    %v173 = vld [vmem:[#allocation4 + $0x358] sm:$0xff]
    %v174 = vld [vmem:[#allocation4 + $0x360] sm:$0xff]
    %v175 = vld [vmem:[#allocation4 + $0x368] sm:$0xff]
    %v176 = vld [vmem:[#allocation4 + $0x370] sm:$0xff]
    %v177 = vld [vmem:[#allocation4 + $0x378] sm:$0xff]
    %v178 = vld [vmem:[#allocation4 + $0x380] sm:$0xff]
    %v179 = vld [vmem:[#allocation4 + $0x388] sm:$0xff]
    %v180 = vld [vmem:[#allocation4 + $0x390] sm:$0xff]
    %v181 = vld [vmem:[#allocation4 + $0x398] sm:$0xff]
    %v182 = vld [vmem:[#allocation4 + $0x3a0] sm:$0xff]
    %v183 = vld [vmem:[#allocation4 + $0x3a8] sm:$0xff]
    %v184 = vld [vmem:[#allocation4 + $0x3b0] sm:$0xff]
    %v185 = vld [vmem:[#allocation4 + $0x3b8] sm:$0xff]
    %v186 = vld [vmem:[#allocation4 + $0x3c0] sm:$0xff]
    %v187 = vld [vmem:[#allocation4 + $0x3c8] sm:$0xff]
    %v188 = vld [vmem:[#allocation4 + $0x3d0] sm:$0xff]
    %v189 = vld [vmem:[#allocation4 + $0x3d8] sm:$0xff]
    %v190 = vld [vmem:[#allocation4 + $0x3e0] sm:$0xff]
    %v191 = vld [vmem:[#allocation4 + $0x3e8] sm:$0xff]
    %v192 = vld [vmem:[#allocation4 + $0x3f0] sm:$0xff]
    %v193 = vld [vmem:[#allocation4 + $0x3f8] sm:$0xff]
    %v194 = vld [vmem:[#allocation4 + $0x400] sm:$0xff]
    %v195 = vld [vmem:[#allocation4 + $0x408] sm:$0xff]
    %v196 = vld [vmem:[#allocation4 + $0x410] sm:$0xff]
    %v197 = vld [vmem:[#allocation4 + $0x418] sm:$0xff]
    %v198 = vld [vmem:[#allocation4 + $0x420] sm:$0xff]
    %v199 = vld [vmem:[#allocation4 + $0x428] sm:$0xff]
    %v200 = vld [vmem:[#allocation4 + $0x430] sm:$0xff]
    %v201 = vld [vmem:[#allocation4 + $0x438] sm:$0xff]
    %v202 = vld [vmem:[#allocation4 + $0x440] sm:$0xff]
    %v203 = vld [vmem:[#allocation4 + $0x448] sm:$0xff]
    %v204 = vld [vmem:[#allocation4 + $0x450] sm:$0xff]
    %v205 = vld [vmem:[#allocation4 + $0x458] sm:$0xff]
    %v206 = vld [vmem:[#allocation4 + $0x460] sm:$0xff]
    %v207 = vld [vmem:[#allocation4 + $0x468] sm:$0xff]
    %v208 = vld [vmem:[#allocation4 + $0x470] sm:$0xff]
    %v209 = vld [vmem:[#allocation4 + $0x478] sm:$0xff]
    %v210 = vld [vmem:[#allocation4 + $0x480] sm:$0xff]
    %v211 = vld [vmem:[#allocation4 + $0x488] sm:$0xff]
    %v212 = vld [vmem:[#allocation4 + $0x490] sm:$0xff]
    %v213 = vld [vmem:[#allocation4 + $0x498] sm:$0xff]
    %v214 = vld [vmem:[#allocation4 + $0x4a0] sm:$0xff]
    %v215 = vld [vmem:[#allocation4 + $0x4a8] sm:$0xff]
    %v216 = vld [vmem:[#allocation4 + $0x4b0] sm:$0xff]
    %v217 = vld [vmem:[#allocation4 + $0x4b8] sm:$0xff]
    %v218 = vld [vmem:[#allocation4 + $0x4c0] sm:$0xff]
    %v219 = vld [vmem:[#allocation4 + $0x4c8] sm:$0xff]
    %v220 = vld [vmem:[#allocation4 + $0x4d0] sm:$0xff]
    %v221 = vld [vmem:[#allocation4 + $0x4d8] sm:$0xff]
    %v222 = vld [vmem:[#allocation4 + $0x4e0] sm:$0xff]
    %v223 = vld [vmem:[#allocation4 + $0x4e8] sm:$0xff]
    %v224 = vld [vmem:[#allocation4 + $0x4f0] sm:$0xff]
    %v225 = vld [vmem:[#allocation4 + $0x4f8] sm:$0xff]
    %v226 = vld [vmem:[#allocation4 + $0x500] sm:$0xff]
    %v227 = vld [vmem:[#allocation4 + $0x508] sm:$0xff]
    %v228 = vld [vmem:[#allocation4 + $0x510] sm:$0xff]
    %v229 = vld [vmem:[#allocation4 + $0x518] sm:$0xff]
    %v230 = vld [vmem:[#allocation4 + $0x520] sm:$0xff]
    %v231 = vld [vmem:[#allocation4 + $0x528] sm:$0xff]
    %v232 = vld [vmem:[#allocation4 + $0x530] sm:$0xff]
    %v233 = vld [vmem:[#allocation4 + $0x538] sm:$0xff]
    %v234 = vld [vmem:[#allocation4 + $0x540] sm:$0xff]
    %v235 = vld [vmem:[#allocation4 + $0x548] sm:$0xff]
    %v236 = vld [vmem:[#allocation4 + $0x550] sm:$0xff]
    %v237 = vld [vmem:[#allocation4 + $0x558] sm:$0xff]
    %v238 = vld [vmem:[#allocation4 + $0x560] sm:$0xff]
    %v239 = vld [vmem:[#allocation4 + $0x568] sm:$0xff]
    %v240 = vld [vmem:[#allocation4 + $0x570] sm:$0xff]
    %v241 = vld [vmem:[#allocation4 + $0x578] sm:$0xff]
    %v242 = vld [vmem:[#allocation4 + $0x580] sm:$0xff]
    %v243 = vld [vmem:[#allocation4 + $0x588] sm:$0xff]
    %v244 = vld [vmem:[#allocation4 + $0x590] sm:$0xff]
    %v245 = vld [vmem:[#allocation4 + $0x598] sm:$0xff]
    %v246 = vld [vmem:[#allocation4 + $0x5a0] sm:$0xff]
    %v247 = vld [vmem:[#allocation4 + $0x5a8] sm:$0xff]
    %v248 = vld [vmem:[#allocation4 + $0x5b0] sm:$0xff]
    %v249 = vld [vmem:[#allocation4 + $0x5b8] sm:$0xff]
    %v250 = vld [vmem:[#allocation4 + $0x5c0] sm:$0xff]
    %v251 = vld [vmem:[#allocation4 + $0x5c8] sm:$0xff]
    %v252 = vld [vmem:[#allocation4 + $0x5d0] sm:$0xff]
    %v253 = vld [vmem:[#allocation4 + $0x5d8] sm:$0xff]
    %v254 = vld [vmem:[#allocation4 + $0x5e0] sm:$0xff]
    %v255 = vld [vmem:[#allocation4 + $0x5e8] sm:$0xff]
    %v256 = vld [vmem:[#allocation4 + $0x5f0] sm:$0xff]
    %v257 = vld [vmem:[#allocation4 + $0x5f8] sm:$0xff]
    %v258 = vld [vmem:[#allocation4 + $0x600] sm:$0xff]
    %v259 = vld [vmem:[#allocation4 + $0x608] sm:$0xff]
    %v260 = vld [vmem:[#allocation4 + $0x610] sm:$0xff]
    %v261 = vld [vmem:[#allocation4 + $0x618] sm:$0xff]
    %v262 = vld [vmem:[#allocation4 + $0x620] sm:$0xff]
    %v263 = vld [vmem:[#allocation4 + $0x628] sm:$0xff]
    %v264 = vld [vmem:[#allocation4 + $0x630] sm:$0xff]
    %v265 = vld [vmem:[#allocation4 + $0x638] sm:$0xff]
    %v266 = vld [vmem:[#allocation4 + $0x640] sm:$0xff]
    %v267 = vld [vmem:[#allocation4 + $0x648] sm:$0xff]
    %v268 = vld [vmem:[#allocation4 + $0x650] sm:$0xff]
    %v269 = vld [vmem:[#allocation4 + $0x658] sm:$0xff]
    %v270 = vld [vmem:[#allocation4 + $0x660] sm:$0xff]
    %v271 = vld [vmem:[#allocation4 + $0x668] sm:$0xff]
    %v272 = vld [vmem:[#allocation4 + $0x670] sm:$0xff]
    %v273 = vld [vmem:[#allocation4 + $0x678] sm:$0xff]
    %v274 = vld [vmem:[#allocation4 + $0x680] sm:$0xff]
    %v275 = vld [vmem:[#allocation4 + $0x688] sm:$0xff]
    %v276 = vld [vmem:[#allocation4 + $0x690] sm:$0xff]
    %v277 = vld [vmem:[#allocation4 + $0x698] sm:$0xff]
    %v278 = vld [vmem:[#allocation4 + $0x6a0] sm:$0xff]
    %v279 = vld [vmem:[#allocation4 + $0x6a8] sm:$0xff]
    %v280 = vld [vmem:[#allocation4 + $0x6b0] sm:$0xff]
    %v281 = vld [vmem:[#allocation4 + $0x6b8] sm:$0xff]
    %v282 = vld [vmem:[#allocation4 + $0x6c0] sm:$0xff]
    %v283 = vld [vmem:[#allocation4 + $0x6c8] sm:$0xff]
    %v284 = vld [vmem:[#allocation4 + $0x6d0] sm:$0xff]
    %v285 = vld [vmem:[#allocation4 + $0x6d8] sm:$0xff]
    %v286 = vld [vmem:[#allocation4 + $0x6e0] sm:$0xff]
    %v287 = vld [vmem:[#allocation4 + $0x6e8] sm:$0xff]
    %v288 = vld [vmem:[#allocation4 + $0x6f0] sm:$0xff]
    %v289 = vld [vmem:[#allocation4 + $0x6f8] sm:$0xff]
    %v290 = vld [vmem:[#allocation4 + $0x700] sm:$0xff]
    %v291 = vld [vmem:[#allocation4 + $0x708] sm:$0xff]
    %v292 = vld [vmem:[#allocation4 + $0x710] sm:$0xff]
    %v293 = vld [vmem:[#allocation4 + $0x718] sm:$0xff]
    %v294 = vld [vmem:[#allocation4 + $0x720] sm:$0xff]
    %v295 = vld [vmem:[#allocation4 + $0x728] sm:$0xff]
    %v296 = vld [vmem:[#allocation4 + $0x730] sm:$0xff]
    %v297 = vld [vmem:[#allocation4 + $0x738] sm:$0xff]
    %v298 = vld [vmem:[#allocation4 + $0x740] sm:$0xff]
    %v299 = vld [vmem:[#allocation4 + $0x748] sm:$0xff]
    %v300 = vld [vmem:[#allocation4 + $0x750] sm:$0xff]
    %v301 = vld [vmem:[#allocation4 + $0x758] sm:$0xff]
    %v302 = vld [vmem:[#allocation4 + $0x760] sm:$0xff]
    %v303 = vld [vmem:[#allocation4 + $0x768] sm:$0xff]
    %v304 = vld [vmem:[#allocation4 + $0x770] sm:$0xff]
    %v305 = vld [vmem:[#allocation4 + $0x778] sm:$0xff]
    %v306 = vld [vmem:[#allocation4 + $0x780] sm:$0xff]
    %v307 = vld [vmem:[#allocation4 + $0x788] sm:$0xff]
    %v308 = vld [vmem:[#allocation4 + $0x790] sm:$0xff]
    %v309 = vld [vmem:[#allocation4 + $0x798] sm:$0xff]
    %v310 = vld [vmem:[#allocation4 + $0x7a0] sm:$0xff]
    %v311 = vld [vmem:[#allocation4 + $0x7a8] sm:$0xff]
    %v312 = vld [vmem:[#allocation4 + $0x7b0] sm:$0xff]
    %v313 = vld [vmem:[#allocation4 + $0x7b8] sm:$0xff]
    %v314 = vld [vmem:[#allocation4 + $0x7c0] sm:$0xff]
    %v315 = vld [vmem:[#allocation4 + $0x7c8] sm:$0xff]
    %v316 = vld [vmem:[#allocation4 + $0x7d0] sm:$0xff]
    %v317 = vld [vmem:[#allocation4 + $0x7d8] sm:$0xff]
    %v318 = vld [vmem:[#allocation4 + $0x7e0] sm:$0xff]
    %v319 = vld [vmem:[#allocation4 + $0x7e8] sm:$0xff]
    %v320 = vld [vmem:[#allocation4 + $0x7f0] sm:$0xff]
    %v321 = vld [vmem:[#allocation4 + $0x7f8] sm:$0xff]
    %v578 = vunpack.c.l.b16 %v66
    %v579 = vunpack.c.h.b16 %v66
    %v580 = vunpack.c.l.b16 %v67
    %v581 = vunpack.c.h.b16 %v67
    %v582 = vunpack.c.l.b16 %v68
    %v583 = vunpack.c.h.b16 %v68
    %v584 = vunpack.c.l.b16 %v69
    %v585 = vunpack.c.h.b16 %v69
    %v586 = vunpack.c.l.b16 %v70
    %v587 = vunpack.c.h.b16 %v70
    %v588 = vunpack.c.l.b16 %v71
    %v589 = vunpack.c.h.b16 %v71
    %v590 = vunpack.c.l.b16 %v72
    %v591 = vunpack.c.h.b16 %v72
    %v592 = vunpack.c.l.b16 %v73
    %v593 = vunpack.c.h.b16 %v73
    %v594 = vunpack.c.l.b16 %v74
    %v595 = vunpack.c.h.b16 %v74
    %v596 = vunpack.c.l.b16 %v75
    %v597 = vunpack.c.h.b16 %v75
    %v598 = vunpack.c.l.b16 %v76
    %v599 = vunpack.c.h.b16 %v76
    %v600 = vunpack.c.l.b16 %v77
    %v601 = vunpack.c.h.b16 %v77
    %v602 = vunpack.c.l.b16 %v78
    %v603 = vunpack.c.h.b16 %v78
    %v604 = vunpack.c.l.b16 %v79
    %v605 = vunpack.c.h.b16 %v79
    %v606 = vunpack.c.l.b16 %v80
    %v607 = vunpack.c.h.b16 %v80
    %v608 = vunpack.c.l.b16 %v81
    %v609 = vunpack.c.h.b16 %v81
    %v610 = vunpack.c.l.b16 %v82
    %v611 = vunpack.c.h.b16 %v82
    %v612 = vunpack.c.l.b16 %v83
    %v613 = vunpack.c.h.b16 %v83
    %v614 = vunpack.c.l.b16 %v84
    %v615 = vunpack.c.h.b16 %v84
    %v616 = vunpack.c.l.b16 %v85
    %v617 = vunpack.c.h.b16 %v85
    %v618 = vunpack.c.l.b16 %v86
    %v619 = vunpack.c.h.b16 %v86
    %v620 = vunpack.c.l.b16 %v87
    %v621 = vunpack.c.h.b16 %v87
    %v622 = vunpack.c.l.b16 %v88
    %v623 = vunpack.c.h.b16 %v88
    %v624 = vunpack.c.l.b16 %v89
    %v625 = vunpack.c.h.b16 %v89
    %v626 = vunpack.c.l.b16 %v90
    %v627 = vunpack.c.h.b16 %v90
    %v628 = vunpack.c.l.b16 %v91
    %v629 = vunpack.c.h.b16 %v91
    %v630 = vunpack.c.l.b16 %v92
    %v631 = vunpack.c.h.b16 %v92
    %v632 = vunpack.c.l.b16 %v93
    %v633 = vunpack.c.h.b16 %v93
    %v634 = vunpack.c.l.b16 %v94
    %v635 = vunpack.c.h.b16 %v94
    %v636 = vunpack.c.l.b16 %v95
    %v637 = vunpack.c.h.b16 %v95
    %v638 = vunpack.c.l.b16 %v96
    %v639 = vunpack.c.h.b16 %v96
    %v640 = vunpack.c.l.b16 %v97
    %v641 = vunpack.c.h.b16 %v97
    %v642 = vunpack.c.l.b16 %v98
    %v643 = vunpack.c.h.b16 %v98
    %v644 = vunpack.c.l.b16 %v99
    %v645 = vunpack.c.h.b16 %v99
    %v646 = vunpack.c.l.b16 %v100
    %v647 = vunpack.c.h.b16 %v100
    %v648 = vunpack.c.l.b16 %v101
    %v649 = vunpack.c.h.b16 %v101
    %v650 = vunpack.c.l.b16 %v102
    %v651 = vunpack.c.h.b16 %v102
    %v652 = vunpack.c.l.b16 %v103
    %v653 = vunpack.c.h.b16 %v103
    %v654 = vunpack.c.l.b16 %v104
    %v655 = vunpack.c.h.b16 %v104
    %v656 = vunpack.c.l.b16 %v105
    %v657 = vunpack.c.h.b16 %v105
    %v658 = vunpack.c.l.b16 %v106
    %v659 = vunpack.c.h.b16 %v106
    %v660 = vunpack.c.l.b16 %v107
    %v661 = vunpack.c.h.b16 %v107
    %v662 = vunpack.c.l.b16 %v108
    %v663 = vunpack.c.h.b16 %v108
    %v664 = vunpack.c.l.b16 %v109
    %v665 = vunpack.c.h.b16 %v109
    %v666 = vunpack.c.l.b16 %v110
    %v667 = vunpack.c.h.b16 %v110
    %v668 = vunpack.c.l.b16 %v111
    %v669 = vunpack.c.h.b16 %v111
    %v670 = vunpack.c.l.b16 %v112
    %v671 = vunpack.c.h.b16 %v112
    %v672 = vunpack.c.l.b16 %v113
    %v673 = vunpack.c.h.b16 %v113
    %v674 = vunpack.c.l.b16 %v114
    %v675 = vunpack.c.h.b16 %v114
    %v676 = vunpack.c.l.b16 %v115
    %v677 = vunpack.c.h.b16 %v115
    %v678 = vunpack.c.l.b16 %v116
    %v679 = vunpack.c.h.b16 %v116
    %v680 = vunpack.c.l.b16 %v117
    %v681 = vunpack.c.h.b16 %v117
    %v682 = vunpack.c.l.b16 %v118
    %v683 = vunpack.c.h.b16 %v118
    %v684 = vunpack.c.l.b16 %v119
    %v685 = vunpack.c.h.b16 %v119
    %v686 = vunpack.c.l.b16 %v120
    %v687 = vunpack.c.h.b16 %v120
    %v688 = vunpack.c.l.b16 %v121
    %v689 = vunpack.c.h.b16 %v121
    %v690 = vunpack.c.l.b16 %v122
    %v691 = vunpack.c.h.b16 %v122
    %v692 = vunpack.c.l.b16 %v123
    %v693 = vunpack.c.h.b16 %v123
    %v694 = vunpack.c.l.b16 %v124
    %v695 = vunpack.c.h.b16 %v124
    %v696 = vunpack.c.l.b16 %v125
    %v697 = vunpack.c.h.b16 %v125
    %v698 = vunpack.c.l.b16 %v126
    %v699 = vunpack.c.h.b16 %v126
    %v700 = vunpack.c.l.b16 %v127
    %v701 = vunpack.c.h.b16 %v127
    %v702 = vunpack.c.l.b16 %v128
    %v703 = vunpack.c.h.b16 %v128
    %v704 = vunpack.c.l.b16 %v129
    %v705 = vunpack.c.h.b16 %v129
    %v706 = vunpack.c.l.b16 %v130
    %v707 = vunpack.c.h.b16 %v130
    %v708 = vunpack.c.l.b16 %v131
    %v709 = vunpack.c.h.b16 %v131
    %v710 = vunpack.c.l.b16 %v132
    %v711 = vunpack.c.h.b16 %v132
    %v712 = vunpack.c.l.b16 %v133
    %v713 = vunpack.c.h.b16 %v133
    %v714 = vunpack.c.l.b16 %v134
    %v715 = vunpack.c.h.b16 %v134
    %v716 = vunpack.c.l.b16 %v135
    %v717 = vunpack.c.h.b16 %v135
    %v718 = vunpack.c.l.b16 %v136
    %v719 = vunpack.c.h.b16 %v136
    %v720 = vunpack.c.l.b16 %v137
    %v721 = vunpack.c.h.b16 %v137
    %v722 = vunpack.c.l.b16 %v138
    %v723 = vunpack.c.h.b16 %v138
    %v724 = vunpack.c.l.b16 %v139
    %v725 = vunpack.c.h.b16 %v139
    %v726 = vunpack.c.l.b16 %v140
    %v727 = vunpack.c.h.b16 %v140
    %v728 = vunpack.c.l.b16 %v141
    %v729 = vunpack.c.h.b16 %v141
    %v730 = vunpack.c.l.b16 %v142
    %v731 = vunpack.c.h.b16 %v142
    %v732 = vunpack.c.l.b16 %v143
    %v733 = vunpack.c.h.b16 %v143
    %v734 = vunpack.c.l.b16 %v144
    %v735 = vunpack.c.h.b16 %v144
    %v736 = vunpack.c.l.b16 %v145
    %v737 = vunpack.c.h.b16 %v145
    %v738 = vunpack.c.l.b16 %v146
    %v739 = vunpack.c.h.b16 %v146
    %v740 = vunpack.c.l.b16 %v147
    %v741 = vunpack.c.h.b16 %v147
    %v742 = vunpack.c.l.b16 %v148
    %v743 = vunpack.c.h.b16 %v148
    %v744 = vunpack.c.l.b16 %v149
    %v745 = vunpack.c.h.b16 %v149
    %v746 = vunpack.c.l.b16 %v150
    %v747 = vunpack.c.h.b16 %v150
    %v748 = vunpack.c.l.b16 %v151
    %v749 = vunpack.c.h.b16 %v151
    %v750 = vunpack.c.l.b16 %v152
    %v751 = vunpack.c.h.b16 %v152
    %v752 = vunpack.c.l.b16 %v153
    %v753 = vunpack.c.h.b16 %v153
    %v754 = vunpack.c.l.b16 %v154
    %v755 = vunpack.c.h.b16 %v154
    %v756 = vunpack.c.l.b16 %v155
    %v757 = vunpack.c.h.b16 %v155
    %v758 = vunpack.c.l.b16 %v156
    %v759 = vunpack.c.h.b16 %v156
    %v760 = vunpack.c.l.b16 %v157
    %v761 = vunpack.c.h.b16 %v157
    %v762 = vunpack.c.l.b16 %v158
    %v763 = vunpack.c.h.b16 %v158
    %v764 = vunpack.c.l.b16 %v159
    %v765 = vunpack.c.h.b16 %v159
    %v766 = vunpack.c.l.b16 %v160
    %v767 = vunpack.c.h.b16 %v160
    %v768 = vunpack.c.l.b16 %v161
    %v769 = vunpack.c.h.b16 %v161
    %v770 = vunpack.c.l.b16 %v162
    %v771 = vunpack.c.h.b16 %v162
    %v772 = vunpack.c.l.b16 %v163
    %v773 = vunpack.c.h.b16 %v163
    %v774 = vunpack.c.l.b16 %v164
    %v775 = vunpack.c.h.b16 %v164
    %v776 = vunpack.c.l.b16 %v165
    %v777 = vunpack.c.h.b16 %v165
    %v778 = vunpack.c.l.b16 %v166
    %v779 = vunpack.c.h.b16 %v166
    %v780 = vunpack.c.l.b16 %v167
    %v781 = vunpack.c.h.b16 %v167
    %v782 = vunpack.c.l.b16 %v168
    %v783 = vunpack.c.h.b16 %v168
    %v784 = vunpack.c.l.b16 %v169
    %v785 = vunpack.c.h.b16 %v169
    %v786 = vunpack.c.l.b16 %v170
    %v787 = vunpack.c.h.b16 %v170
    %v788 = vunpack.c.l.b16 %v171
    %v789 = vunpack.c.h.b16 %v171
    %v790 = vunpack.c.l.b16 %v172
    %v791 = vunpack.c.h.b16 %v172
    %v792 = vunpack.c.l.b16 %v173
    %v793 = vunpack.c.h.b16 %v173
    %v794 = vunpack.c.l.b16 %v174
    %v795 = vunpack.c.h.b16 %v174
    %v796 = vunpack.c.l.b16 %v175
    %v797 = vunpack.c.h.b16 %v175
    %v798 = vunpack.c.l.b16 %v176
    %v799 = vunpack.c.h.b16 %v176
    %v800 = vunpack.c.l.b16 %v177
    %v801 = vunpack.c.h.b16 %v177
    %v802 = vunpack.c.l.b16 %v178
    %v803 = vunpack.c.h.b16 %v178
    %v804 = vunpack.c.l.b16 %v179
    %v805 = vunpack.c.h.b16 %v179
    %v806 = vunpack.c.l.b16 %v180
    %v807 = vunpack.c.h.b16 %v180
    %v808 = vunpack.c.l.b16 %v181
    %v809 = vunpack.c.h.b16 %v181
    %v810 = vunpack.c.l.b16 %v182
    %v811 = vunpack.c.h.b16 %v182
    %v812 = vunpack.c.l.b16 %v183
    %v813 = vunpack.c.h.b16 %v183
    %v814 = vunpack.c.l.b16 %v184
    %v815 = vunpack.c.h.b16 %v184
    %v816 = vunpack.c.l.b16 %v185
    %v817 = vunpack.c.h.b16 %v185
    %v818 = vunpack.c.l.b16 %v186
    %v819 = vunpack.c.h.b16 %v186
    %v820 = vunpack.c.l.b16 %v187
    %v821 = vunpack.c.h.b16 %v187
    %v822 = vunpack.c.l.b16 %v188
    %v823 = vunpack.c.h.b16 %v188
    %v824 = vunpack.c.l.b16 %v189
    %v825 = vunpack.c.h.b16 %v189
    %v826 = vunpack.c.l.b16 %v190
    %v827 = vunpack.c.h.b16 %v190
    %v828 = vunpack.c.l.b16 %v191
    %v829 = vunpack.c.h.b16 %v191
    %v830 = vunpack.c.l.b16 %v192
    %v831 = vunpack.c.h.b16 %v192
    %v832 = vunpack.c.l.b16 %v193
    %v833 = vunpack.c.h.b16 %v193
    %v834 = vunpack.c.l.b16 %v194
    %v835 = vunpack.c.h.b16 %v194
    %v836 = vunpack.c.l.b16 %v195
    %v837 = vunpack.c.h.b16 %v195
    %v838 = vunpack.c.l.b16 %v196
    %v839 = vunpack.c.h.b16 %v196
    %v840 = vunpack.c.l.b16 %v197
    %v841 = vunpack.c.h.b16 %v197
    %v842 = vunpack.c.l.b16 %v198
    %v843 = vunpack.c.h.b16 %v198
    %v844 = vunpack.c.l.b16 %v199
    %v845 = vunpack.c.h.b16 %v199
    %v846 = vunpack.c.l.b16 %v200
    %v847 = vunpack.c.h.b16 %v200
    %v848 = vunpack.c.l.b16 %v201
    %v849 = vunpack.c.h.b16 %v201
    %v850 = vunpack.c.l.b16 %v202
    %v851 = vunpack.c.h.b16 %v202
    %v852 = vunpack.c.l.b16 %v203
    %v853 = vunpack.c.h.b16 %v203
    %v854 = vunpack.c.l.b16 %v204
    %v855 = vunpack.c.h.b16 %v204
    %v856 = vunpack.c.l.b16 %v205
    %v857 = vunpack.c.h.b16 %v205
    %v858 = vunpack.c.l.b16 %v206
    %v859 = vunpack.c.h.b16 %v206
    %v860 = vunpack.c.l.b16 %v207
    %v861 = vunpack.c.h.b16 %v207
    %v862 = vunpack.c.l.b16 %v208
    %v863 = vunpack.c.h.b16 %v208
    %v864 = vunpack.c.l.b16 %v209
    %v865 = vunpack.c.h.b16 %v209
    %v866 = vunpack.c.l.b16 %v210
    %v867 = vunpack.c.h.b16 %v210
    %v868 = vunpack.c.l.b16 %v211
    %v869 = vunpack.c.h.b16 %v211
    %v870 = vunpack.c.l.b16 %v212
    %v871 = vunpack.c.h.b16 %v212
    %v872 = vunpack.c.l.b16 %v213
    %v873 = vunpack.c.h.b16 %v213
    %v874 = vunpack.c.l.b16 %v214
    %v875 = vunpack.c.h.b16 %v214
    %v876 = vunpack.c.l.b16 %v215
    %v877 = vunpack.c.h.b16 %v215
    %v878 = vunpack.c.l.b16 %v216
    %v879 = vunpack.c.h.b16 %v216
    %v880 = vunpack.c.l.b16 %v217
    %v881 = vunpack.c.h.b16 %v217
    %v882 = vunpack.c.l.b16 %v218
    %v883 = vunpack.c.h.b16 %v218
    %v884 = vunpack.c.l.b16 %v219
    %v885 = vunpack.c.h.b16 %v219
    %v886 = vunpack.c.l.b16 %v220
    %v887 = vunpack.c.h.b16 %v220
    %v888 = vunpack.c.l.b16 %v221
    %v889 = vunpack.c.h.b16 %v221
    %v890 = vunpack.c.l.b16 %v222
    %v891 = vunpack.c.h.b16 %v222
    %v892 = vunpack.c.l.b16 %v223
    %v893 = vunpack.c.h.b16 %v223
    %v894 = vunpack.c.l.b16 %v224
    %v895 = vunpack.c.h.b16 %v224
    %v896 = vunpack.c.l.b16 %v225
    %v897 = vunpack.c.h.b16 %v225
    %v898 = vunpack.c.l.b16 %v226
    %v899 = vunpack.c.h.b16 %v226
    %v900 = vunpack.c.l.b16 %v227
    %v901 = vunpack.c.h.b16 %v227
    %v902 = vunpack.c.l.b16 %v228
    %v903 = vunpack.c.h.b16 %v228
    %v904 = vunpack.c.l.b16 %v229
    %v905 = vunpack.c.h.b16 %v229
    %v906 = vunpack.c.l.b16 %v230
    %v907 = vunpack.c.h.b16 %v230
    %v908 = vunpack.c.l.b16 %v231
    %v909 = vunpack.c.h.b16 %v231
    %v910 = vunpack.c.l.b16 %v232
    %v911 = vunpack.c.h.b16 %v232
    %v912 = vunpack.c.l.b16 %v233
    %v913 = vunpack.c.h.b16 %v233
    %v914 = vunpack.c.l.b16 %v234
    %v915 = vunpack.c.h.b16 %v234
    %v916 = vunpack.c.l.b16 %v235
    %v917 = vunpack.c.h.b16 %v235
    %v918 = vunpack.c.l.b16 %v236
    %v919 = vunpack.c.h.b16 %v236
    %v920 = vunpack.c.l.b16 %v237
    %v921 = vunpack.c.h.b16 %v237
    %v922 = vunpack.c.l.b16 %v238
    %v923 = vunpack.c.h.b16 %v238
    %v924 = vunpack.c.l.b16 %v239
    %v925 = vunpack.c.h.b16 %v239
    %v926 = vunpack.c.l.b16 %v240
    %v927 = vunpack.c.h.b16 %v240
    %v928 = vunpack.c.l.b16 %v241
    %v929 = vunpack.c.h.b16 %v241
    %v930 = vunpack.c.l.b16 %v242
    %v931 = vunpack.c.h.b16 %v242
    %v932 = vunpack.c.l.b16 %v243
    %v933 = vunpack.c.h.b16 %v243
    %v934 = vunpack.c.l.b16 %v244
    %v935 = vunpack.c.h.b16 %v244
    %v936 = vunpack.c.l.b16 %v245
    %v937 = vunpack.c.h.b16 %v245
    %v938 = vunpack.c.l.b16 %v246
    %v939 = vunpack.c.h.b16 %v246
    %v940 = vunpack.c.l.b16 %v247
    %v941 = vunpack.c.h.b16 %v247
    %v942 = vunpack.c.l.b16 %v248
    %v943 = vunpack.c.h.b16 %v248
    %v944 = vunpack.c.l.b16 %v249
    %v945 = vunpack.c.h.b16 %v249
    %v946 = vunpack.c.l.b16 %v250
    %v947 = vunpack.c.h.b16 %v250
    %v948 = vunpack.c.l.b16 %v251
    %v949 = vunpack.c.h.b16 %v251
    %v950 = vunpack.c.l.b16 %v252
    %v951 = vunpack.c.h.b16 %v252
    %v952 = vunpack.c.l.b16 %v253
    %v953 = vunpack.c.h.b16 %v253
    %v954 = vunpack.c.l.b16 %v254
    %v955 = vunpack.c.h.b16 %v254
    %v956 = vunpack.c.l.b16 %v255
    %v957 = vunpack.c.h.b16 %v255
    %v958 = vunpack.c.l.b16 %v256
    %v959 = vunpack.c.h.b16 %v256
    %v960 = vunpack.c.l.b16 %v257
    %v961 = vunpack.c.h.b16 %v257
    %v962 = vunpack.c.l.b16 %v258
    %v963 = vunpack.c.h.b16 %v258
    %v964 = vunpack.c.l.b16 %v259
    %v965 = vunpack.c.h.b16 %v259
    %v966 = vunpack.c.l.b16 %v260
    %v967 = vunpack.c.h.b16 %v260
    %v968 = vunpack.c.l.b16 %v261
    %v969 = vunpack.c.h.b16 %v261
    %v970 = vunpack.c.l.b16 %v262
    %v971 = vunpack.c.h.b16 %v262
    %v972 = vunpack.c.l.b16 %v263
    %v973 = vunpack.c.h.b16 %v263
    %v974 = vunpack.c.l.b16 %v264
    %v975 = vunpack.c.h.b16 %v264
    %v976 = vunpack.c.l.b16 %v265
    %v977 = vunpack.c.h.b16 %v265
    %v978 = vunpack.c.l.b16 %v266
    %v979 = vunpack.c.h.b16 %v266
    %v980 = vunpack.c.l.b16 %v267
    %v981 = vunpack.c.h.b16 %v267
    %v982 = vunpack.c.l.b16 %v268
    %v983 = vunpack.c.h.b16 %v268
    %v984 = vunpack.c.l.b16 %v269
    %v985 = vunpack.c.h.b16 %v269
    %v986 = vunpack.c.l.b16 %v270
    %v987 = vunpack.c.h.b16 %v270
    %v988 = vunpack.c.l.b16 %v271
    %v989 = vunpack.c.h.b16 %v271
    %v990 = vunpack.c.l.b16 %v272
    %v991 = vunpack.c.h.b16 %v272
    %v992 = vunpack.c.l.b16 %v273
    %v993 = vunpack.c.h.b16 %v273
    %v994 = vunpack.c.l.b16 %v274
    %v995 = vunpack.c.h.b16 %v274
    %v996 = vunpack.c.l.b16 %v275
    %v997 = vunpack.c.h.b16 %v275
    %v998 = vunpack.c.l.b16 %v276
    %v999 = vunpack.c.h.b16 %v276
    %v1000 = vunpack.c.l.b16 %v277
    %v1001 = vunpack.c.h.b16 %v277
    %v1002 = vunpack.c.l.b16 %v278
    %v1003 = vunpack.c.h.b16 %v278
    %v1004 = vunpack.c.l.b16 %v279
    %v1005 = vunpack.c.h.b16 %v279
    %v1006 = vunpack.c.l.b16 %v280
    %v1007 = vunpack.c.h.b16 %v280
    %v1008 = vunpack.c.l.b16 %v281
    %v1009 = vunpack.c.h.b16 %v281
    %v1010 = vunpack.c.l.b16 %v282
    %v1011 = vunpack.c.h.b16 %v282
    %v1012 = vunpack.c.l.b16 %v283
    %v1013 = vunpack.c.h.b16 %v283
    %v1014 = vunpack.c.l.b16 %v284
    %v1015 = vunpack.c.h.b16 %v284
    %v1016 = vunpack.c.l.b16 %v285
    %v1017 = vunpack.c.h.b16 %v285
    %v1018 = vunpack.c.l.b16 %v286
    %v1019 = vunpack.c.h.b16 %v286
    %v1020 = vunpack.c.l.b16 %v287
    %v1021 = vunpack.c.h.b16 %v287
    %v1022 = vunpack.c.l.b16 %v288
    %v1023 = vunpack.c.h.b16 %v288
    %v1024 = vunpack.c.l.b16 %v289
    %v1025 = vunpack.c.h.b16 %v289
    %v1026 = vunpack.c.l.b16 %v290
    %v1027 = vunpack.c.h.b16 %v290
    %v1028 = vunpack.c.l.b16 %v291
    %v1029 = vunpack.c.h.b16 %v291
    %v1030 = vunpack.c.l.b16 %v292
    %v1031 = vunpack.c.h.b16 %v292
    %v1032 = vunpack.c.l.b16 %v293
    %v1033 = vunpack.c.h.b16 %v293
    %v1034 = vunpack.c.l.b16 %v294
    %v1035 = vunpack.c.h.b16 %v294
    %v1036 = vunpack.c.l.b16 %v295
    %v1037 = vunpack.c.h.b16 %v295
    %v1038 = vunpack.c.l.b16 %v296
    %v1039 = vunpack.c.h.b16 %v296
    %v1040 = vunpack.c.l.b16 %v297
    %v1041 = vunpack.c.h.b16 %v297
    %v1042 = vunpack.c.l.b16 %v298
    %v1043 = vunpack.c.h.b16 %v298
    %v1044 = vunpack.c.l.b16 %v299
    %v1045 = vunpack.c.h.b16 %v299
    %v1046 = vunpack.c.l.b16 %v300
    %v1047 = vunpack.c.h.b16 %v300
    %v1048 = vunpack.c.l.b16 %v301
    %v1049 = vunpack.c.h.b16 %v301
    %v1050 = vunpack.c.l.b16 %v302
    %v1051 = vunpack.c.h.b16 %v302
    %v1052 = vunpack.c.l.b16 %v303
    %v1053 = vunpack.c.h.b16 %v303
    %v1054 = vunpack.c.l.b16 %v304
    %v1055 = vunpack.c.h.b16 %v304
    %v1056 = vunpack.c.l.b16 %v305
    %v1057 = vunpack.c.h.b16 %v305
    %v1058 = vunpack.c.l.b16 %v306
    %v1059 = vunpack.c.h.b16 %v306
    %v1060 = vunpack.c.l.b16 %v307
    %v1061 = vunpack.c.h.b16 %v307
    %v1062 = vunpack.c.l.b16 %v308
    %v1063 = vunpack.c.h.b16 %v308
    %v1064 = vunpack.c.l.b16 %v309
    %v1065 = vunpack.c.h.b16 %v309
    %v1066 = vunpack.c.l.b16 %v310
    %v1067 = vunpack.c.h.b16 %v310
    %v1068 = vunpack.c.l.b16 %v311
    %v1069 = vunpack.c.h.b16 %v311
    %v1070 = vunpack.c.l.b16 %v312
    %v1071 = vunpack.c.h.b16 %v312
    %v1072 = vunpack.c.l.b16 %v313
    %v1073 = vunpack.c.h.b16 %v313
    %v1074 = vunpack.c.l.b16 %v314
    %v1075 = vunpack.c.h.b16 %v314
    %v1076 = vunpack.c.l.b16 %v315
    %v1077 = vunpack.c.h.b16 %v315
    %v1078 = vunpack.c.l.b16 %v316
    %v1079 = vunpack.c.h.b16 %v316
    %v1080 = vunpack.c.l.b16 %v317
    %v1081 = vunpack.c.h.b16 %v317
    %v1082 = vunpack.c.l.b16 %v318
    %v1083 = vunpack.c.h.b16 %v318
    %v1084 = vunpack.c.l.b16 %v319
    %v1085 = vunpack.c.h.b16 %v319
    %v1086 = vunpack.c.l.b16 %v320
    %v1087 = vunpack.c.h.b16 %v320
    %v1088 = vunpack.c.l.b16 %v321
    %v1089 = vunpack.c.h.b16 %v321
    %v1090 = vpack.c.b16 %v582, %v578
    %v1091 = vpack.c.b16 %v583, %v579
    %v1092 = vpack.c.b16 %v584, %v580
    %v1093 = vpack.c.b16 %v585, %v581
    %v1094 = vpack.c.b16 %v590, %v586
    %v1095 = vpack.c.b16 %v591, %v587
    %v1096 = vpack.c.b16 %v592, %v588
    %v1097 = vpack.c.b16 %v593, %v589
    %v1098 = vpack.c.b16 %v598, %v594
    %v1099 = vpack.c.b16 %v599, %v595
    %v1100 = vpack.c.b16 %v600, %v596
    %v1101 = vpack.c.b16 %v601, %v597
    %v1102 = vpack.c.b16 %v606, %v602
    %v1103 = vpack.c.b16 %v607, %v603
    %v1104 = vpack.c.b16 %v608, %v604
    %v1105 = vpack.c.b16 %v609, %v605
    %v1106 = vpack.c.b16 %v614, %v610
    %v1107 = vpack.c.b16 %v615, %v611
    %v1108 = vpack.c.b16 %v616, %v612
    %v1109 = vpack.c.b16 %v617, %v613
    %v1110 = vpack.c.b16 %v622, %v618
    %v1111 = vpack.c.b16 %v623, %v619
    %v1112 = vpack.c.b16 %v624, %v620
    %v1113 = vpack.c.b16 %v625, %v621
    %v1114 = vpack.c.b16 %v630, %v626
    %v1115 = vpack.c.b16 %v631, %v627
    %v1116 = vpack.c.b16 %v632, %v628
    %v1117 = vpack.c.b16 %v633, %v629
    %v1118 = vpack.c.b16 %v638, %v634
    %v1119 = vpack.c.b16 %v639, %v635
    %v1120 = vpack.c.b16 %v640, %v636
    %v1121 = vpack.c.b16 %v641, %v637
    %v1122 = vpack.c.b16 %v646, %v642
    %v1123 = vpack.c.b16 %v647, %v643
    %v1124 = vpack.c.b16 %v648, %v644
    %v1125 = vpack.c.b16 %v649, %v645
    %v1126 = vpack.c.b16 %v654, %v650
    %v1127 = vpack.c.b16 %v655, %v651
    %v1128 = vpack.c.b16 %v656, %v652
    %v1129 = vpack.c.b16 %v657, %v653
    %v1130 = vpack.c.b16 %v662, %v658
    %v1131 = vpack.c.b16 %v663, %v659
    %v1132 = vpack.c.b16 %v664, %v660
    %v1133 = vpack.c.b16 %v665, %v661
    %v1134 = vpack.c.b16 %v670, %v666
    %v1135 = vpack.c.b16 %v671, %v667
    %v1136 = vpack.c.b16 %v672, %v668
    %v1137 = vpack.c.b16 %v673, %v669
    %v1138 = vpack.c.b16 %v678, %v674
    %v1139 = vpack.c.b16 %v679, %v675
    %v1140 = vpack.c.b16 %v680, %v676
    %v1141 = vpack.c.b16 %v681, %v677
    %v1142 = vpack.c.b16 %v686, %v682
    %v1143 = vpack.c.b16 %v687, %v683
    %v1144 = vpack.c.b16 %v688, %v684
    %v1145 = vpack.c.b16 %v689, %v685
    %v1146 = vpack.c.b16 %v694, %v690
    %v1147 = vpack.c.b16 %v695, %v691
    %v1148 = vpack.c.b16 %v696, %v692
    %v1149 = vpack.c.b16 %v697, %v693
    %v1150 = vpack.c.b16 %v702, %v698
    %v1151 = vpack.c.b16 %v703, %v699
    %v1152 = vpack.c.b16 %v704, %v700
    %v1153 = vpack.c.b16 %v705, %v701
    %v1154 = vpack.c.b16 %v710, %v706
    %v1155 = vpack.c.b16 %v711, %v707
    %v1156 = vpack.c.b16 %v712, %v708
    %v1157 = vpack.c.b16 %v713, %v709
    %v1158 = vpack.c.b16 %v718, %v714
    %v1159 = vpack.c.b16 %v719, %v715
    %v1160 = vpack.c.b16 %v720, %v716
    %v1161 = vpack.c.b16 %v721, %v717
    %v1162 = vpack.c.b16 %v726, %v722
    %v1163 = vpack.c.b16 %v727, %v723
    %v1164 = vpack.c.b16 %v728, %v724
    %v1165 = vpack.c.b16 %v729, %v725
    %v1166 = vpack.c.b16 %v734, %v730
    %v1167 = vpack.c.b16 %v735, %v731
    %v1168 = vpack.c.b16 %v736, %v732
    %v1169 = vpack.c.b16 %v737, %v733
    %v1170 = vpack.c.b16 %v742, %v738
    %v1171 = vpack.c.b16 %v743, %v739
    %v1172 = vpack.c.b16 %v744, %v740
    %v1173 = vpack.c.b16 %v745, %v741
    %v1174 = vpack.c.b16 %v750, %v746
    %v1175 = vpack.c.b16 %v751, %v747
    %v1176 = vpack.c.b16 %v752, %v748
    %v1177 = vpack.c.b16 %v753, %v749
    %v1178 = vpack.c.b16 %v758, %v754
    %v1179 = vpack.c.b16 %v759, %v755
    %v1180 = vpack.c.b16 %v760, %v756
    %v1181 = vpack.c.b16 %v761, %v757
    %v1182 = vpack.c.b16 %v766, %v762
    %v1183 = vpack.c.b16 %v767, %v763
    %v1184 = vpack.c.b16 %v768, %v764
    %v1185 = vpack.c.b16 %v769, %v765
    %v1186 = vpack.c.b16 %v774, %v770
    %v1187 = vpack.c.b16 %v775, %v771
    %v1188 = vpack.c.b16 %v776, %v772
    %v1189 = vpack.c.b16 %v777, %v773
    %v1190 = vpack.c.b16 %v782, %v778
    %v1191 = vpack.c.b16 %v783, %v779
    %v1192 = vpack.c.b16 %v784, %v780
    %v1193 = vpack.c.b16 %v785, %v781
    %v1194 = vpack.c.b16 %v790, %v786
    %v1195 = vpack.c.b16 %v791, %v787
    %v1196 = vpack.c.b16 %v792, %v788
    %v1197 = vpack.c.b16 %v793, %v789
    %v1198 = vpack.c.b16 %v798, %v794
    %v1199 = vpack.c.b16 %v799, %v795
    %v1200 = vpack.c.b16 %v800, %v796
    %v1201 = vpack.c.b16 %v801, %v797
    %v1202 = vpack.c.b16 %v806, %v802
    %v1203 = vpack.c.b16 %v807, %v803
    %v1204 = vpack.c.b16 %v808, %v804
    %v1205 = vpack.c.b16 %v809, %v805
    %v1206 = vpack.c.b16 %v814, %v810
    %v1207 = vpack.c.b16 %v815, %v811
    %v1208 = vpack.c.b16 %v816, %v812
    %v1209 = vpack.c.b16 %v817, %v813
    %v1210 = vpack.c.b16 %v822, %v818
    %v1211 = vpack.c.b16 %v823, %v819
    %v1212 = vpack.c.b16 %v824, %v820
    %v1213 = vpack.c.b16 %v825, %v821
    %v1214 = vpack.c.b16 %v830, %v826
    %v1215 = vpack.c.b16 %v831, %v827
    %v1216 = vpack.c.b16 %v832, %v828
    %v1217 = vpack.c.b16 %v833, %v829
    %v1218 = vpack.c.b16 %v838, %v834
    %v1219 = vpack.c.b16 %v839, %v835
    %v1220 = vpack.c.b16 %v840, %v836
    %v1221 = vpack.c.b16 %v841, %v837
    %v1222 = vpack.c.b16 %v846, %v842
    %v1223 = vpack.c.b16 %v847, %v843
    %v1224 = vpack.c.b16 %v848, %v844
    %v1225 = vpack.c.b16 %v849, %v845
    %v1226 = vpack.c.b16 %v854, %v850
    %v1227 = vpack.c.b16 %v855, %v851
    %v1228 = vpack.c.b16 %v856, %v852
    %v1229 = vpack.c.b16 %v857, %v853
    %v1230 = vpack.c.b16 %v862, %v858
    %v1231 = vpack.c.b16 %v863, %v859
    %v1232 = vpack.c.b16 %v864, %v860
    %v1233 = vpack.c.b16 %v865, %v861
    %v1234 = vpack.c.b16 %v870, %v866
    %v1235 = vpack.c.b16 %v871, %v867
    %v1236 = vpack.c.b16 %v872, %v868
    %v1237 = vpack.c.b16 %v873, %v869
    %v1238 = vpack.c.b16 %v878, %v874
    %v1239 = vpack.c.b16 %v879, %v875
    %v1240 = vpack.c.b16 %v880, %v876
    %v1241 = vpack.c.b16 %v881, %v877
    %v1242 = vpack.c.b16 %v886, %v882
    %v1243 = vpack.c.b16 %v887, %v883
    %v1244 = vpack.c.b16 %v888, %v884
    %v1245 = vpack.c.b16 %v889, %v885
    %v1246 = vpack.c.b16 %v894, %v890
    %v1247 = vpack.c.b16 %v895, %v891
    %v1248 = vpack.c.b16 %v896, %v892
    %v1249 = vpack.c.b16 %v897, %v893
    %v1250 = vpack.c.b16 %v902, %v898
    %v1251 = vpack.c.b16 %v903, %v899
    %v1252 = vpack.c.b16 %v904, %v900
    %v1253 = vpack.c.b16 %v905, %v901
    %v1254 = vpack.c.b16 %v910, %v906
    %v1255 = vpack.c.b16 %v911, %v907
    %v1256 = vpack.c.b16 %v912, %v908
    %v1257 = vpack.c.b16 %v913, %v909
    %v1258 = vpack.c.b16 %v918, %v914
    %v1259 = vpack.c.b16 %v919, %v915
    %v1260 = vpack.c.b16 %v920, %v916
    %v1261 = vpack.c.b16 %v921, %v917
    %v1262 = vpack.c.b16 %v926, %v922
    %v1263 = vpack.c.b16 %v927, %v923
    %v1264 = vpack.c.b16 %v928, %v924
    %v1265 = vpack.c.b16 %v929, %v925
    %v1266 = vpack.c.b16 %v934, %v930
    %v1267 = vpack.c.b16 %v935, %v931
    %v1268 = vpack.c.b16 %v936, %v932
    %v1269 = vpack.c.b16 %v937, %v933
    %v1270 = vpack.c.b16 %v942, %v938
    %v1271 = vpack.c.b16 %v943, %v939
    %v1272 = vpack.c.b16 %v944, %v940
    %v1273 = vpack.c.b16 %v945, %v941
    %v1274 = vpack.c.b16 %v950, %v946
    %v1275 = vpack.c.b16 %v951, %v947
    %v1276 = vpack.c.b16 %v952, %v948
    %v1277 = vpack.c.b16 %v953, %v949
    %v1278 = vpack.c.b16 %v958, %v954
    %v1279 = vpack.c.b16 %v959, %v955
    %v1280 = vpack.c.b16 %v960, %v956
    %v1281 = vpack.c.b16 %v961, %v957
    %v1282 = vpack.c.b16 %v966, %v962
    %v1283 = vpack.c.b16 %v967, %v963
    %v1284 = vpack.c.b16 %v968, %v964
    %v1285 = vpack.c.b16 %v969, %v965
    %v1286 = vpack.c.b16 %v974, %v970
    %v1287 = vpack.c.b16 %v975, %v971
    %v1288 = vpack.c.b16 %v976, %v972
    %v1289 = vpack.c.b16 %v977, %v973
    %v1290 = vpack.c.b16 %v982, %v978
    %v1291 = vpack.c.b16 %v983, %v979
    %v1292 = vpack.c.b16 %v984, %v980
    %v1293 = vpack.c.b16 %v985, %v981
    %v1294 = vpack.c.b16 %v990, %v986
    %v1295 = vpack.c.b16 %v991, %v987
    %v1296 = vpack.c.b16 %v992, %v988
    %v1297 = vpack.c.b16 %v993, %v989
    %v1298 = vpack.c.b16 %v998, %v994
    %v1299 = vpack.c.b16 %v999, %v995
    %v1300 = vpack.c.b16 %v1000, %v996
    %v1301 = vpack.c.b16 %v1001, %v997
    %v1302 = vpack.c.b16 %v1006, %v1002
    %v1303 = vpack.c.b16 %v1007, %v1003
    %v1304 = vpack.c.b16 %v1008, %v1004
    %v1305 = vpack.c.b16 %v1009, %v1005
    %v1306 = vpack.c.b16 %v1014, %v1010
    %v1307 = vpack.c.b16 %v1015, %v1011
    %v1308 = vpack.c.b16 %v1016, %v1012
    %v1309 = vpack.c.b16 %v1017, %v1013
    %v1310 = vpack.c.b16 %v1022, %v1018
    %v1311 = vpack.c.b16 %v1023, %v1019
    %v1312 = vpack.c.b16 %v1024, %v1020
    %v1313 = vpack.c.b16 %v1025, %v1021
    %v1314 = vpack.c.b16 %v1030, %v1026
    %v1315 = vpack.c.b16 %v1031, %v1027
    %v1316 = vpack.c.b16 %v1032, %v1028
    %v1317 = vpack.c.b16 %v1033, %v1029
    %v1318 = vpack.c.b16 %v1038, %v1034
    %v1319 = vpack.c.b16 %v1039, %v1035
    %v1320 = vpack.c.b16 %v1040, %v1036
    %v1321 = vpack.c.b16 %v1041, %v1037
    %v1322 = vpack.c.b16 %v1046, %v1042
    %v1323 = vpack.c.b16 %v1047, %v1043
    %v1324 = vpack.c.b16 %v1048, %v1044
    %v1325 = vpack.c.b16 %v1049, %v1045
    %v1326 = vpack.c.b16 %v1054, %v1050
    %v1327 = vpack.c.b16 %v1055, %v1051
    %v1328 = vpack.c.b16 %v1056, %v1052
    %v1329 = vpack.c.b16 %v1057, %v1053
    %v1330 = vpack.c.b16 %v1062, %v1058
    %v1331 = vpack.c.b16 %v1063, %v1059
    %v1332 = vpack.c.b16 %v1064, %v1060
    %v1333 = vpack.c.b16 %v1065, %v1061
    %v1334 = vpack.c.b16 %v1070, %v1066
    %v1335 = vpack.c.b16 %v1071, %v1067
    %v1336 = vpack.c.b16 %v1072, %v1068
    %v1337 = vpack.c.b16 %v1073, %v1069
    %v1338 = vpack.c.b16 %v1078, %v1074
    %v1339 = vpack.c.b16 %v1079, %v1075
    %v1340 = vpack.c.b16 %v1080, %v1076
    %v1341 = vpack.c.b16 %v1081, %v1077
    %v1342 = vpack.c.b16 %v1086, %v1082
    %v1343 = vpack.c.b16 %v1087, %v1083
    %v1344 = vpack.c.b16 %v1088, %v1084
    %v1345 = vpack.c.b16 %v1089, %v1085
    %1602 = vmatprep.subr.bf16.mxu0 %v1119
    %1603 = vmatpush1.bf16.msra.mxu0 %v1118
    %1604 = vmatprep.subr.bf16.mxu0 %v1115
    %1605 = vmatpush1.bf16.msra.mxu0 %v1114
    %1606 = vmatprep.subr.bf16.mxu0 %v1111
    %1607 = vmatpush1.bf16.msra.mxu0 %v1110
    %1608 = vmatprep.subr.bf16.mxu0 %v1107
    %1609 = vmatpush1.bf16.msra.mxu0 %v1106
    %1610 = vmatprep.subr.bf16.mxu0 %v1103
    %1611 = vmatpush1.bf16.msra.mxu0 %v1102
    %1612 = vmatprep.subr.bf16.mxu0 %v1099
    %1613 = vmatpush1.bf16.msra.mxu0 %v1098
    %1614 = vmatprep.subr.bf16.mxu0 %v1095
    %1615 = vmatpush1.bf16.msra.mxu0 %v1094
    %1616 = vmatprep.subr.bf16.mxu0 %v1091
    %1617 = vmatpush1.bf16.msra.mxu0 %v1090
    %1618 = vmatprep.subr.bf16.mxu0 %v1151
    %1619 = vmatpush2.bf16.msra.mxu0 %v1150
    %1620 = vmatprep.subr.bf16.mxu0 %v1147
    %1621 = vmatpush2.bf16.msra.mxu0 %v1146
    %1622 = vmatprep.subr.bf16.mxu0 %v1143
    %1623 = vmatpush2.bf16.msra.mxu0 %v1142
    %1624 = vmatprep.subr.bf16.mxu0 %v1139
    %1625 = vmatpush2.bf16.msra.mxu0 %v1138
    %1626 = vmatprep.subr.bf16.mxu0 %v1135
    %1627 = vmatpush2.bf16.msra.mxu0 %v1134
    %1628 = vmatprep.subr.bf16.mxu0 %v1131
    %1629 = vmatpush2.bf16.msra.mxu0 %v1130
    %1630 = vmatprep.subr.bf16.mxu0 %v1127
    %1631 = vmatpush2.bf16.msra.mxu0 %v1126
    %1632 = vmatprep.subr.bf16.mxu0 %v1123
    %1633 = vmatpush2.bf16.msra.mxu0 %v1122
    %1634 = vmatprep.mubr.bf16.mxu0 %v59
    %1635 = vmatmul.mubr.bf16.gmra.mxu0 %v58
    %v1636 = vpop.f32.mrf.mxu0
    %v1637 = vadd.f32 0.0, %v1636
    %v1638 = vpop.f32.mrf.mxu0
    %v1639 = vadd.f32 0.0, %v1638
    %v1640 = vpop.f32.mrf.mxu0
    %v1641 = vpop.f32.mrf.mxu0
    %1642 = vdwg.mxu0
    %1643 = vmatprep.subr.bf16.mxu0 %v1183
    %1644 = vmatpush1.bf16.msra.mxu0 %v1182
    %1645 = vmatprep.subr.bf16.mxu0 %v1179
    %1646 = vmatpush1.bf16.msra.mxu0 %v1178
    %1647 = vmatprep.subr.bf16.mxu0 %v1175
    %1648 = vmatpush1.bf16.msra.mxu0 %v1174
    %1649 = vmatprep.subr.bf16.mxu0 %v1171
    %1650 = vmatpush1.bf16.msra.mxu0 %v1170
    %1651 = vmatprep.subr.bf16.mxu0 %v1167
    %1652 = vmatpush1.bf16.msra.mxu0 %v1166
    %1653 = vmatprep.subr.bf16.mxu0 %v1163
    %1654 = vmatpush1.bf16.msra.mxu0 %v1162
    %1655 = vmatprep.subr.bf16.mxu0 %v1159
    %1656 = vmatpush1.bf16.msra.mxu0 %v1158
    %1657 = vmatprep.subr.bf16.mxu0 %v1155
    %1658 = vmatpush1.bf16.msra.mxu0 %v1154
    %1659 = vmatprep.subr.bf16.mxu0 %v1215
    %1660 = vmatpush2.bf16.msra.mxu0 %v1214
    %1661 = vmatprep.subr.bf16.mxu0 %v1211
    %1662 = vmatpush2.bf16.msra.mxu0 %v1210
    %1663 = vmatprep.subr.bf16.mxu0 %v1207
    %1664 = vmatpush2.bf16.msra.mxu0 %v1206
    %1665 = vmatprep.subr.bf16.mxu0 %v1203
    %1666 = vmatpush2.bf16.msra.mxu0 %v1202
    %1667 = vmatprep.subr.bf16.mxu0 %v1199
    %1668 = vmatpush2.bf16.msra.mxu0 %v1198
    %1669 = vmatprep.subr.bf16.mxu0 %v1195
    %1670 = vmatpush2.bf16.msra.mxu0 %v1194
    %1671 = vmatprep.subr.bf16.mxu0 %v1191
    %1672 = vmatpush2.bf16.msra.mxu0 %v1190
    %1673 = vmatprep.subr.bf16.mxu0 %v1187
    %1674 = vmatpush2.bf16.msra.mxu0 %v1186
    %1675 = vmatprep.mubr.bf16.mxu0 %v61
    %1676 = vmatmul.mubr.bf16.gmra.mxu0 %v60
    %v1677 = vpop.f32.mrf.mxu0
    %v1678 = vadd.f32 %v1637, %v1677
    %v1679 = vpop.f32.mrf.mxu0
    %v1680 = vadd.f32 %v1639, %v1679
    %v1681 = vpop.f32.mrf.mxu0
    %v1682 = vpop.f32.mrf.mxu0
    %1683 = vdwg.mxu0
    %1684 = vmatprep.subr.bf16.mxu0 %v1247
    %1685 = vmatpush1.bf16.msra.mxu0 %v1246
    %1686 = vmatprep.subr.bf16.mxu0 %v1243
    %1687 = vmatpush1.bf16.msra.mxu0 %v1242
    %1688 = vmatprep.subr.bf16.mxu0 %v1239
    %1689 = vmatpush1.bf16.msra.mxu0 %v1238
    %1690 = vmatprep.subr.bf16.mxu0 %v1235
    %1691 = vmatpush1.bf16.msra.mxu0 %v1234
    %1692 = vmatprep.subr.bf16.mxu0 %v1231
    %1693 = vmatpush1.bf16.msra.mxu0 %v1230
    %1694 = vmatprep.subr.bf16.mxu0 %v1227
    %1695 = vmatpush1.bf16.msra.mxu0 %v1226
    %1696 = vmatprep.subr.bf16.mxu0 %v1223
    %1697 = vmatpush1.bf16.msra.mxu0 %v1222
    %1698 = vmatprep.subr.bf16.mxu0 %v1219
    %1699 = vmatpush1.bf16.msra.mxu0 %v1218
    %1700 = vmatprep.subr.bf16.mxu0 %v1279
    %1701 = vmatpush2.bf16.msra.mxu0 %v1278
    %1702 = vmatprep.subr.bf16.mxu0 %v1275
    %1703 = vmatpush2.bf16.msra.mxu0 %v1274
    %1704 = vmatprep.subr.bf16.mxu0 %v1271
    %1705 = vmatpush2.bf16.msra.mxu0 %v1270
    %1706 = vmatprep.subr.bf16.mxu0 %v1267
    %1707 = vmatpush2.bf16.msra.mxu0 %v1266
    %1708 = vmatprep.subr.bf16.mxu0 %v1263
    %1709 = vmatpush2.bf16.msra.mxu0 %v1262
    %1710 = vmatprep.subr.bf16.mxu0 %v1259
    %1711 = vmatpush2.bf16.msra.mxu0 %v1258
    %1712 = vmatprep.subr.bf16.mxu0 %v1255
    %1713 = vmatpush2.bf16.msra.mxu0 %v1254
    %1714 = vmatprep.subr.bf16.mxu0 %v1251
    %1715 = vmatpush2.bf16.msra.mxu0 %v1250
    %1716 = vmatprep.mubr.bf16.mxu0 %v63
    %1717 = vmatmul.mubr.bf16.gmra.mxu0 %v62
    %v1718 = vpop.f32.mrf.mxu0
    %v1719 = vadd.f32 %v1678, %v1718
    %v1720 = vpop.f32.mrf.mxu0
    %v1721 = vadd.f32 %v1680, %v1720
    %v1722 = vpop.f32.mrf.mxu0
    %v1723 = vpop.f32.mrf.mxu0
    %1724 = vdwg.mxu0
    %1725 = vmatprep.subr.bf16.mxu0 %v1311
    %1726 = vmatpush1.bf16.msra.mxu0 %v1310
    %1727 = vmatprep.subr.bf16.mxu0 %v1307
    %1728 = vmatpush1.bf16.msra.mxu0 %v1306
    %1729 = vmatprep.subr.bf16.mxu0 %v1303
    %1730 = vmatpush1.bf16.msra.mxu0 %v1302
    %1731 = vmatprep.subr.bf16.mxu0 %v1299
    %1732 = vmatpush1.bf16.msra.mxu0 %v1298
    %1733 = vmatprep.subr.bf16.mxu0 %v1295
    %1734 = vmatpush1.bf16.msra.mxu0 %v1294
    %1735 = vmatprep.subr.bf16.mxu0 %v1291
    %1736 = vmatpush1.bf16.msra.mxu0 %v1290
    %1737 = vmatprep.subr.bf16.mxu0 %v1287
    %1738 = vmatpush1.bf16.msra.mxu0 %v1286
    %1739 = vmatprep.subr.bf16.mxu0 %v1283
    %1740 = vmatpush1.bf16.msra.mxu0 %v1282
    %1741 = vmatprep.subr.bf16.mxu0 %v1343
    %1742 = vmatpush2.bf16.msra.mxu0 %v1342
    %1743 = vmatprep.subr.bf16.mxu0 %v1339
    %1744 = vmatpush2.bf16.msra.mxu0 %v1338
    %1745 = vmatprep.subr.bf16.mxu0 %v1335
    %1746 = vmatpush2.bf16.msra.mxu0 %v1334
    %1747 = vmatprep.subr.bf16.mxu0 %v1331
    %1748 = vmatpush2.bf16.msra.mxu0 %v1330
    %1749 = vmatprep.subr.bf16.mxu0 %v1327
    %1750 = vmatpush2.bf16.msra.mxu0 %v1326
    %1751 = vmatprep.subr.bf16.mxu0 %v1323
    %1752 = vmatpush2.bf16.msra.mxu0 %v1322
    %1753 = vmatprep.subr.bf16.mxu0 %v1319
    %1754 = vmatpush2.bf16.msra.mxu0 %v1318
    %1755 = vmatprep.subr.bf16.mxu0 %v1315
    %1756 = vmatpush2.bf16.msra.mxu0 %v1314
    %1757 = vmatprep.mubr.bf16.mxu0 %v65
    %1758 = vmatmul.mubr.bf16.gmra.mxu0 %v64
    %v1759 = vpop.f32.mrf.mxu0
    %v1760 = vadd.f32 %v1719, %v1759
    %v1761 = vpop.f32.mrf.mxu0
    %v1762 = vadd.f32 %v1721, %v1761
    %v1763 = vpop.f32.mrf.mxu0
    %v1764 = vpop.f32.mrf.mxu0
    %1765 = vdwg.mxu0
    %1766 = vmatprep.subr.bf16.mxu0 %v1121
    %1767 = vmatpush1.bf16.msra.mxu0 %v1120
    %1768 = vmatprep.subr.bf16.mxu0 %v1117
    %1769 = vmatpush1.bf16.msra.mxu0 %v1116
    %1770 = vmatprep.subr.bf16.mxu0 %v1113
    %1771 = vmatpush1.bf16.msra.mxu0 %v1112
    %1772 = vmatprep.subr.bf16.mxu0 %v1109
    %1773 = vmatpush1.bf16.msra.mxu0 %v1108
    %1774 = vmatprep.subr.bf16.mxu0 %v1105
    %1775 = vmatpush1.bf16.msra.mxu0 %v1104
    %1776 = vmatprep.subr.bf16.mxu0 %v1101
    %1777 = vmatpush1.bf16.msra.mxu0 %v1100
    %1778 = vmatprep.subr.bf16.mxu0 %v1097
    %1779 = vmatpush1.bf16.msra.mxu0 %v1096
    %1780 = vmatprep.subr.bf16.mxu0 %v1093
    %1781 = vmatpush1.bf16.msra.mxu0 %v1092
    %1782 = vmatprep.subr.bf16.mxu0 %v1153
    %1783 = vmatpush2.bf16.msra.mxu0 %v1152
    %1784 = vmatprep.subr.bf16.mxu0 %v1149
    %1785 = vmatpush2.bf16.msra.mxu0 %v1148
    %1786 = vmatprep.subr.bf16.mxu0 %v1145
    %1787 = vmatpush2.bf16.msra.mxu0 %v1144
    %1788 = vmatprep.subr.bf16.mxu0 %v1141
    %1789 = vmatpush2.bf16.msra.mxu0 %v1140
    %1790 = vmatprep.subr.bf16.mxu0 %v1137
    %1791 = vmatpush2.bf16.msra.mxu0 %v1136
    %1792 = vmatprep.subr.bf16.mxu0 %v1133
    %1793 = vmatpush2.bf16.msra.mxu0 %v1132
    %1794 = vmatprep.subr.bf16.mxu0 %v1129
    %1795 = vmatpush2.bf16.msra.mxu0 %v1128
    %1796 = vmatprep.subr.bf16.mxu0 %v1125
    %1797 = vmatpush2.bf16.msra.mxu0 %v1124
    %1798 = vmatprep.mubr.bf16.mxu0 %v59
    %1799 = vmatmul.mubr.bf16.gmra.mxu0 %v58
    %v1800 = vpop.f32.mrf.mxu0
    %v1801 = vadd.f32 0.0, %v1800
    %v1802 = vpop.f32.mrf.mxu0
    %v1803 = vadd.f32 0.0, %v1802
    %v1804 = vpop.f32.mrf.mxu0
    %v1805 = vpop.f32.mrf.mxu0
    %1806 = vdwg.mxu0
    %1807 = vmatprep.subr.bf16.mxu0 %v1185
    %1808 = vmatpush1.bf16.msra.mxu0 %v1184
    %1809 = vmatprep.subr.bf16.mxu0 %v1181
    %1810 = vmatpush1.bf16.msra.mxu0 %v1180
    %1811 = vmatprep.subr.bf16.mxu0 %v1177
    %1812 = vmatpush1.bf16.msra.mxu0 %v1176
    %1813 = vmatprep.subr.bf16.mxu0 %v1173
    %1814 = vmatpush1.bf16.msra.mxu0 %v1172
    %1815 = vmatprep.subr.bf16.mxu0 %v1169
    %1816 = vmatpush1.bf16.msra.mxu0 %v1168
    %1817 = vmatprep.subr.bf16.mxu0 %v1165
    %1818 = vmatpush1.bf16.msra.mxu0 %v1164
    %1819 = vmatprep.subr.bf16.mxu0 %v1161
    %1820 = vmatpush1.bf16.msra.mxu0 %v1160
    %1821 = vmatprep.subr.bf16.mxu0 %v1157
    %1822 = vmatpush1.bf16.msra.mxu0 %v1156
    %1823 = vmatprep.subr.bf16.mxu0 %v1217
    %1824 = vmatpush2.bf16.msra.mxu0 %v1216
    %1825 = vmatprep.subr.bf16.mxu0 %v1213
    %1826 = vmatpush2.bf16.msra.mxu0 %v1212
    %1827 = vmatprep.subr.bf16.mxu0 %v1209
    %1828 = vmatpush2.bf16.msra.mxu0 %v1208
    %1829 = vmatprep.subr.bf16.mxu0 %v1205
    %1830 = vmatpush2.bf16.msra.mxu0 %v1204
    %1831 = vmatprep.subr.bf16.mxu0 %v1201
    %1832 = vmatpush2.bf16.msra.mxu0 %v1200
    %1833 = vmatprep.subr.bf16.mxu0 %v1197
    %1834 = vmatpush2.bf16.msra.mxu0 %v1196
    %1835 = vmatprep.subr.bf16.mxu0 %v1193
    %1836 = vmatpush2.bf16.msra.mxu0 %v1192
    %1837 = vmatprep.subr.bf16.mxu0 %v1189
    %1838 = vmatpush2.bf16.msra.mxu0 %v1188
    %1839 = vmatprep.mubr.bf16.mxu0 %v61
    %1840 = vmatmul.mubr.bf16.gmra.mxu0 %v60
    %v1841 = vpop.f32.mrf.mxu0
    %v1842 = vadd.f32 %v1801, %v1841
    %v1843 = vpop.f32.mrf.mxu0
    %v1844 = vadd.f32 %v1803, %v1843
    %v1845 = vpop.f32.mrf.mxu0
    %v1846 = vpop.f32.mrf.mxu0
    %1847 = vdwg.mxu0
    %1848 = vmatprep.subr.bf16.mxu0 %v1249
    %1849 = vmatpush1.bf16.msra.mxu0 %v1248
    %1850 = vmatprep.subr.bf16.mxu0 %v1245
    %1851 = vmatpush1.bf16.msra.mxu0 %v1244
    %1852 = vmatprep.subr.bf16.mxu0 %v1241
    %1853 = vmatpush1.bf16.msra.mxu0 %v1240
    %1854 = vmatprep.subr.bf16.mxu0 %v1237
    %1855 = vmatpush1.bf16.msra.mxu0 %v1236
    %1856 = vmatprep.subr.bf16.mxu0 %v1233
    %1857 = vmatpush1.bf16.msra.mxu0 %v1232
    %1858 = vmatprep.subr.bf16.mxu0 %v1229
    %1859 = vmatpush1.bf16.msra.mxu0 %v1228
    %1860 = vmatprep.subr.bf16.mxu0 %v1225
    %1861 = vmatpush1.bf16.msra.mxu0 %v1224
    %1862 = vmatprep.subr.bf16.mxu0 %v1221
    %1863 = vmatpush1.bf16.msra.mxu0 %v1220
    %1864 = vmatprep.subr.bf16.mxu0 %v1281
    %1865 = vmatpush2.bf16.msra.mxu0 %v1280
    %1866 = vmatprep.subr.bf16.mxu0 %v1277
    %1867 = vmatpush2.bf16.msra.mxu0 %v1276
    %1868 = vmatprep.subr.bf16.mxu0 %v1273
    %1869 = vmatpush2.bf16.msra.mxu0 %v1272
    %1870 = vmatprep.subr.bf16.mxu0 %v1269
    %1871 = vmatpush2.bf16.msra.mxu0 %v1268
    %1872 = vmatprep.subr.bf16.mxu0 %v1265
    %1873 = vmatpush2.bf16.msra.mxu0 %v1264
    %1874 = vmatprep.subr.bf16.mxu0 %v1261
    %1875 = vmatpush2.bf16.msra.mxu0 %v1260
    %1876 = vmatprep.subr.bf16.mxu0 %v1257
    %1877 = vmatpush2.bf16.msra.mxu0 %v1256
    %1878 = vmatprep.subr.bf16.mxu0 %v1253
    %1879 = vmatpush2.bf16.msra.mxu0 %v1252
    %1880 = vmatprep.mubr.bf16.mxu0 %v63
    %1881 = vmatmul.mubr.bf16.gmra.mxu0 %v62
    %v1882 = vpop.f32.mrf.mxu0
    %v1883 = vadd.f32 %v1842, %v1882
    %v1884 = vpop.f32.mrf.mxu0
    %v1885 = vadd.f32 %v1844, %v1884
    %v1886 = vpop.f32.mrf.mxu0
    %v1887 = vpop.f32.mrf.mxu0
    %1888 = vdwg.mxu0
    %1889 = vmatprep.subr.bf16.mxu0 %v1313
    %1890 = vmatpush1.bf16.msra.mxu0 %v1312
    %1891 = vmatprep.subr.bf16.mxu0 %v1309
    %1892 = vmatpush1.bf16.msra.mxu0 %v1308
    %1893 = vmatprep.subr.bf16.mxu0 %v1305
    %1894 = vmatpush1.bf16.msra.mxu0 %v1304
    %1895 = vmatprep.subr.bf16.mxu0 %v1301
    %1896 = vmatpush1.bf16.msra.mxu0 %v1300
    %1897 = vmatprep.subr.bf16.mxu0 %v1297
    %1898 = vmatpush1.bf16.msra.mxu0 %v1296
    %1899 = vmatprep.subr.bf16.mxu0 %v1293
    %1900 = vmatpush1.bf16.msra.mxu0 %v1292
    %1901 = vmatprep.subr.bf16.mxu0 %v1289
    %1902 = vmatpush1.bf16.msra.mxu0 %v1288
    %1903 = vmatprep.subr.bf16.mxu0 %v1285
    %1904 = vmatpush1.bf16.msra.mxu0 %v1284
    %1905 = vmatprep.subr.bf16.mxu0 %v1345
    %1906 = vmatpush2.bf16.msra.mxu0 %v1344
    %1907 = vmatprep.subr.bf16.mxu0 %v1341
    %1908 = vmatpush2.bf16.msra.mxu0 %v1340
    %1909 = vmatprep.subr.bf16.mxu0 %v1337
    %1910 = vmatpush2.bf16.msra.mxu0 %v1336
    %1911 = vmatprep.subr.bf16.mxu0 %v1333
    %1912 = vmatpush2.bf16.msra.mxu0 %v1332
    %1913 = vmatprep.subr.bf16.mxu0 %v1329
    %1914 = vmatpush2.bf16.msra.mxu0 %v1328
    %1915 = vmatprep.subr.bf16.mxu0 %v1325
    %1916 = vmatpush2.bf16.msra.mxu0 %v1324
    %1917 = vmatprep.subr.bf16.mxu0 %v1321
    %1918 = vmatpush2.bf16.msra.mxu0 %v1320
    %1919 = vmatprep.subr.bf16.mxu0 %v1317
    %1920 = vmatpush2.bf16.msra.mxu0 %v1316
    %1921 = vmatprep.mubr.bf16.mxu0 %v65
    %1922 = vmatmul.mubr.bf16.gmra.mxu0 %v64
    %v1923 = vpop.f32.mrf.mxu0
    %v1924 = vadd.f32 %v1883, %v1923
    %v1925 = vpop.f32.mrf.mxu0
    %v1926 = vadd.f32 %v1885, %v1925
    %v1927 = vpop.f32.mrf.mxu0
    %v1928 = vpop.f32.mrf.mxu0
    %1929 = vdwg.mxu0
    %v1930 = vadd.f32 %v46, %v1760
    %v1931 = vadd.f32 %v47, %v1762
    %v1932 = vadd.f32 %v48, %v1924
    %v1933 = vadd.f32 %v49, %v1926
    %1934 = vst [vmem:[#allocation2] sm:$0xff] %v1930
    %1935 = vst [vmem:[#allocation2 + $0x8] sm:$0xff] %v1931
    %1936 = vst [vmem:[#allocation2 + $0x10] sm:$0xff] %v1932
    %1937 = vst [vmem:[#allocation2 + $0x18] sm:$0xff] %v1933
    // Predicated region
    $region30: #{tpu_custom_call.1} parent=1 // pred_check
      %p1938 = pneg %p38
    $region31: #{tpu_custom_call.1} parent=1 // pred_check_branch
      %1940 = sbr.rel (%p1938) target = $region33
    $region32: #{tpu_custom_call.1} parent=1 // pred_region
      %v1941 = vld [vmem:[#allocation2] sm:$0xff]
      %v1942 = vld [vmem:[#allocation2 + $0x8] sm:$0xff]
      %v1943 = vld [vmem:[#allocation2 + $0x10] sm:$0xff]
      %v1944 = vld [vmem:[#allocation2 + $0x18] sm:$0xff]
      %v1945 = vld [vmem:[%s2] sm:$0xf]
      %v1947 = vlaneseq
      %v1948 = vshrl.u32 %v1947, 7
      %v1949 = vsub.s32 0, %v1948
      %v1950 = vrot.slane %v1945, %v1949
      %v1951 = vlaneseq
      %v1952 = vshrl.u32 %v1951, 7
      %v1953 = vsub.s32 1, %v1952
      %v1954 = vrot.slane %v1945, %v1953
      %v1955 = vlaneseq
      %v1956 = vshrl.u32 %v1955, 7
      %v1957 = vsub.s32 2, %v1956
      %v1958 = vrot.slane %v1945, %v1957
      %v1959 = vlaneseq
      %v1960 = vshrl.u32 %v1959, 7
      %v1961 = vsub.s32 3, %v1960
      %v1962 = vrot.slane %v1945, %v1961
      %v1967 = vadd.f32 %v1941, %v1950
      %v1968 = vadd.f32 %v1942, %v1954
      %v1969 = vadd.f32 %v1943, %v1958
      %v1970 = vadd.f32 %v1944, %v1962
      %v1971 = vmul.f32 %v1967, 0.2
      %v1972 = vmul.f32 %v1968, 0.2
      %v1973 = vmul.f32 %v1969, 0.2
      %v1974 = vmul.f32 %v1970, 0.2
      %v1975 = vmax.f32 %v1967, %v1971
      %v1976 = vmax.f32 %v1968, %v1972
      %v1977 = vmax.f32 %v1969, %v1973
      %v1978 = vmax.f32 %v1970, %v1974
      %v1979 = vpack.c.bf16 %v1975, %v1975
      %v1980 = vpack.c.bf16 %v1976, %v1976
      %v1981 = vpack.c.bf16 %v1977, %v1977
      %v1982 = vpack.c.bf16 %v1978, %v1978
      %v1983 = vld [vmem:[%s3] sm:$0xf]
      %v1984 = vld [vmem:[%s3 + $0x4] sm:$0xf]
      %v1985 = vld [vmem:[%s3 + $0x8] sm:$0xf]
      %v1986 = vld [vmem:[%s3 + $0xc] sm:$0xf]
      %v1987 = vld [vmem:[%s3 + $0x10] sm:$0xf]
      %v1988 = vld [vmem:[%s3 + $0x14] sm:$0xf]
      %v1989 = vld [vmem:[%s3 + $0x18] sm:$0xf]
      %v1990 = vld [vmem:[%s3 + $0x1c] sm:$0xf]
      %v1991 = vld [vmem:[%s3 + $0x20] sm:$0xf]
      %v1992 = vld [vmem:[%s3 + $0x24] sm:$0xf]
      %v1993 = vld [vmem:[%s3 + $0x28] sm:$0xf]
      %v1994 = vld [vmem:[%s3 + $0x2c] sm:$0xf]
      %v1995 = vld [vmem:[%s3 + $0x30] sm:$0xf]
      %v1996 = vld [vmem:[%s3 + $0x34] sm:$0xf]
      %v1997 = vld [vmem:[%s3 + $0x38] sm:$0xf]
      %v1998 = vld [vmem:[%s3 + $0x3c] sm:$0xf]
      %v1999 = vld [vmem:[%s3 + $0x40] sm:$0xf]
      %v2000 = vld [vmem:[%s3 + $0x44] sm:$0xf]
      %v2001 = vld [vmem:[%s3 + $0x48] sm:$0xf]
      %v2002 = vld [vmem:[%s3 + $0x4c] sm:$0xf]
      %v2003 = vld [vmem:[%s3 + $0x50] sm:$0xf]
      %v2004 = vld [vmem:[%s3 + $0x54] sm:$0xf]
      %v2005 = vld [vmem:[%s3 + $0x58] sm:$0xf]
      %v2006 = vld [vmem:[%s3 + $0x5c] sm:$0xf]
      %v2007 = vld [vmem:[%s3 + $0x60] sm:$0xf]
      %v2008 = vld [vmem:[%s3 + $0x64] sm:$0xf]
      %v2009 = vld [vmem:[%s3 + $0x68] sm:$0xf]
      %v2010 = vld [vmem:[%s3 + $0x6c] sm:$0xf]
      %v2011 = vld [vmem:[%s3 + $0x70] sm:$0xf]
      %v2012 = vld [vmem:[%s3 + $0x74] sm:$0xf]
      %v2013 = vld [vmem:[%s3 + $0x78] sm:$0xf]
      %v2014 = vld [vmem:[%s3 + $0x7c] sm:$0xf]
      %v2015 = vld [vmem:[%s3 + $0x80] sm:$0xf]
      %v2016 = vld [vmem:[%s3 + $0x84] sm:$0xf]
      %v2017 = vld [vmem:[%s3 + $0x88] sm:$0xf]
      %v2018 = vld [vmem:[%s3 + $0x8c] sm:$0xf]
      %v2019 = vld [vmem:[%s3 + $0x90] sm:$0xf]
      %v2020 = vld [vmem:[%s3 + $0x94] sm:$0xf]
      %v2021 = vld [vmem:[%s3 + $0x98] sm:$0xf]
      %v2022 = vld [vmem:[%s3 + $0x9c] sm:$0xf]
      %v2023 = vld [vmem:[%s3 + $0xa0] sm:$0xf]
      %v2024 = vld [vmem:[%s3 + $0xa4] sm:$0xf]
      %v2025 = vld [vmem:[%s3 + $0xa8] sm:$0xf]
      %v2026 = vld [vmem:[%s3 + $0xac] sm:$0xf]
      %v2027 = vld [vmem:[%s3 + $0xb0] sm:$0xf]
      %v2028 = vld [vmem:[%s3 + $0xb4] sm:$0xf]
      %v2029 = vld [vmem:[%s3 + $0xb8] sm:$0xf]
      %v2030 = vld [vmem:[%s3 + $0xbc] sm:$0xf]
      %v2031 = vld [vmem:[%s3 + $0xc0] sm:$0xf]
      %v2032 = vld [vmem:[%s3 + $0xc4] sm:$0xf]
      %v2033 = vld [vmem:[%s3 + $0xc8] sm:$0xf]
      %v2034 = vld [vmem:[%s3 + $0xcc] sm:$0xf]
      %v2035 = vld [vmem:[%s3 + $0xd0] sm:$0xf]
      %v2036 = vld [vmem:[%s3 + $0xd4] sm:$0xf]
      %v2037 = vld [vmem:[%s3 + $0xd8] sm:$0xf]
      %v2038 = vld [vmem:[%s3 + $0xdc] sm:$0xf]
      %v2039 = vld [vmem:[%s3 + $0xe0] sm:$0xf]
      %v2040 = vld [vmem:[%s3 + $0xe4] sm:$0xf]
      %v2041 = vld [vmem:[%s3 + $0xe8] sm:$0xf]
      %v2042 = vld [vmem:[%s3 + $0xec] sm:$0xf]
      %v2043 = vld [vmem:[%s3 + $0xf0] sm:$0xf]
      %v2044 = vld [vmem:[%s3 + $0xf4] sm:$0xf]
      %v2045 = vld [vmem:[%s3 + $0xf8] sm:$0xf]
      %v2046 = vld [vmem:[%s3 + $0xfc] sm:$0xf]
      %v2047 = vld [vmem:[#allocation3] sm:$0x1]
      %v2049 = vlaneseq
      %v2050 = vshrl.u32 %v2049, 7
      %v2051 = vsub.s32 0, %v2050
      %v2052 = vrot.slane %v2047, %v2051
      %2053 = vset.pattern.permute.xlu0 0
      %2054 = vperm.xlu0 %2053, %v2052
      %v2055 = vpop.permute.xlu0 %2054
      %v2121 = vunpack.c.l.b16 %v1983
      %v2122 = vunpack.c.l.b16 %v1984
      %v2123 = vunpack.c.l.b16 %v1985
      %v2124 = vunpack.c.l.b16 %v1986
      %v2125 = vunpack.c.l.b16 %v1987
      %v2126 = vunpack.c.l.b16 %v1988
      %v2127 = vunpack.c.l.b16 %v1989
      %v2128 = vunpack.c.l.b16 %v1990
      %v2129 = vunpack.c.l.b16 %v1991
      %v2130 = vunpack.c.l.b16 %v1992
      %v2131 = vunpack.c.l.b16 %v1993
      %v2132 = vunpack.c.l.b16 %v1994
      %v2133 = vunpack.c.l.b16 %v1995
      %v2134 = vunpack.c.l.b16 %v1996
      %v2135 = vunpack.c.l.b16 %v1997
      %v2136 = vunpack.c.l.b16 %v1998
      %v2137 = vunpack.c.l.b16 %v1999
      %v2138 = vunpack.c.l.b16 %v2000
      %v2139 = vunpack.c.l.b16 %v2001
      %v2140 = vunpack.c.l.b16 %v2002
      %v2141 = vunpack.c.l.b16 %v2003
      %v2142 = vunpack.c.l.b16 %v2004
      %v2143 = vunpack.c.l.b16 %v2005
      %v2144 = vunpack.c.l.b16 %v2006
      %v2145 = vunpack.c.l.b16 %v2007
      %v2146 = vunpack.c.l.b16 %v2008
      %v2147 = vunpack.c.l.b16 %v2009
      %v2148 = vunpack.c.l.b16 %v2010
      %v2149 = vunpack.c.l.b16 %v2011
      %v2150 = vunpack.c.l.b16 %v2012
      %v2151 = vunpack.c.l.b16 %v2013
      %v2152 = vunpack.c.l.b16 %v2014
      %v2153 = vunpack.c.l.b16 %v2015
      %v2154 = vunpack.c.l.b16 %v2016
      %v2155 = vunpack.c.l.b16 %v2017
      %v2156 = vunpack.c.l.b16 %v2018
      %v2157 = vunpack.c.l.b16 %v2019
      %v2158 = vunpack.c.l.b16 %v2020
      %v2159 = vunpack.c.l.b16 %v2021
      %v2160 = vunpack.c.l.b16 %v2022
      %v2161 = vunpack.c.l.b16 %v2023
      %v2162 = vunpack.c.l.b16 %v2024
      %v2163 = vunpack.c.l.b16 %v2025
      %v2164 = vunpack.c.l.b16 %v2026
      %v2165 = vunpack.c.l.b16 %v2027
      %v2166 = vunpack.c.l.b16 %v2028
      %v2167 = vunpack.c.l.b16 %v2029
      %v2168 = vunpack.c.l.b16 %v2030
      %v2169 = vunpack.c.l.b16 %v2031
      %v2170 = vunpack.c.l.b16 %v2032
      %v2171 = vunpack.c.l.b16 %v2033
      %v2172 = vunpack.c.l.b16 %v2034
      %v2173 = vunpack.c.l.b16 %v2035
      %v2174 = vunpack.c.l.b16 %v2036
      %v2175 = vunpack.c.l.b16 %v2037
      %v2176 = vunpack.c.l.b16 %v2038
      %v2177 = vunpack.c.l.b16 %v2039
      %v2178 = vunpack.c.l.b16 %v2040
      %v2179 = vunpack.c.l.b16 %v2041
      %v2180 = vunpack.c.l.b16 %v2042
      %v2181 = vunpack.c.l.b16 %v2043
      %v2182 = vunpack.c.l.b16 %v2044
      %v2183 = vunpack.c.l.b16 %v2045
      %v2184 = vunpack.c.l.b16 %v2046
      %v2185 = vpack.c.b16 %v2122, %v2121
      %v2186 = vpack.c.b16 %v2124, %v2123
      %v2187 = vpack.c.b16 %v2126, %v2125
      %v2188 = vpack.c.b16 %v2128, %v2127
      %v2189 = vpack.c.b16 %v2130, %v2129
      %v2190 = vpack.c.b16 %v2132, %v2131
      %v2191 = vpack.c.b16 %v2134, %v2133
      %v2192 = vpack.c.b16 %v2136, %v2135
      %v2193 = vpack.c.b16 %v2138, %v2137
      %v2194 = vpack.c.b16 %v2140, %v2139
      %v2195 = vpack.c.b16 %v2142, %v2141
      %v2196 = vpack.c.b16 %v2144, %v2143
      %v2197 = vpack.c.b16 %v2146, %v2145
      %v2198 = vpack.c.b16 %v2148, %v2147
      %v2199 = vpack.c.b16 %v2150, %v2149
      %v2200 = vpack.c.b16 %v2152, %v2151
      %v2201 = vpack.c.b16 %v2154, %v2153
      %v2202 = vpack.c.b16 %v2156, %v2155
      %v2203 = vpack.c.b16 %v2158, %v2157
      %v2204 = vpack.c.b16 %v2160, %v2159
      %v2205 = vpack.c.b16 %v2162, %v2161
      %v2206 = vpack.c.b16 %v2164, %v2163
      %v2207 = vpack.c.b16 %v2166, %v2165
      %v2208 = vpack.c.b16 %v2168, %v2167
      %v2209 = vpack.c.b16 %v2170, %v2169
      %v2210 = vpack.c.b16 %v2172, %v2171
      %v2211 = vpack.c.b16 %v2174, %v2173
      %v2212 = vpack.c.b16 %v2176, %v2175
      %v2213 = vpack.c.b16 %v2178, %v2177
      %v2214 = vpack.c.b16 %v2180, %v2179
      %v2215 = vpack.c.b16 %v2182, %v2181
      %v2216 = vpack.c.b16 %v2184, %v2183
      %2249 = vmatprep.subr.bf16.mxu0 0
      %2250 = vmatpush1.bf16.msra.mxu0 %v2192
      %2251 = vmatprep.subr.bf16.mxu0 0
      %2252 = vmatpush1.bf16.msra.mxu0 %v2191
      %2253 = vmatprep.subr.bf16.mxu0 0
      %2254 = vmatpush1.bf16.msra.mxu0 %v2190
      %2255 = vmatprep.subr.bf16.mxu0 0
      %2256 = vmatpush1.bf16.msra.mxu0 %v2189
      %2257 = vmatprep.subr.bf16.mxu0 0
      %2258 = vmatpush1.bf16.msra.mxu0 %v2188
      %2259 = vmatprep.subr.bf16.mxu0 0
      %2260 = vmatpush1.bf16.msra.mxu0 %v2187
      %2261 = vmatprep.subr.bf16.mxu0 0
      %2262 = vmatpush1.bf16.msra.mxu0 %v2186
      %2263 = vmatprep.subr.bf16.mxu0 0
      %2264 = vmatpush1.bf16.msra.mxu0 %v2185
      %2265 = vmatprep.subr.bf16.mxu0 0
      %2266 = vmatpush2.bf16.msra.mxu0 %v2200
      %2267 = vmatprep.subr.bf16.mxu0 0
      %2268 = vmatpush2.bf16.msra.mxu0 %v2199
      %2269 = vmatprep.subr.bf16.mxu0 0
      %2270 = vmatpush2.bf16.msra.mxu0 %v2198
      %2271 = vmatprep.subr.bf16.mxu0 0
      %2272 = vmatpush2.bf16.msra.mxu0 %v2197
      %2273 = vmatprep.subr.bf16.mxu0 0
      %2274 = vmatpush2.bf16.msra.mxu0 %v2196
      %2275 = vmatprep.subr.bf16.mxu0 0
      %2276 = vmatpush2.bf16.msra.mxu0 %v2195
      %2277 = vmatprep.subr.bf16.mxu0 0
      %2278 = vmatpush2.bf16.msra.mxu0 %v2194
      %2279 = vmatprep.subr.bf16.mxu0 0
      %2280 = vmatpush2.bf16.msra.mxu0 %v2193
      %2281 = vmatprep.mubr.bf16.mxu0 %v1980
      %2282 = vmatmul.mubr.bf16.gmra.mxu0 %v1979
      %v2283 = vpop.f32.mrf.mxu0
      %v2284 = vadd.f32 %v2055, %v2283
      %v2285 = vpop.f32.mrf.mxu0
      %v2286 = vpop.f32.mrf.mxu0
      %v2287 = vpop.f32.mrf.mxu0
      %2288 = vdwg.mxu0
      %2289 = vmatprep.subr.bf16.mxu0 0
      %2290 = vmatpush1.bf16.msra.mxu0 %v2208
      %2291 = vmatprep.subr.bf16.mxu0 0
      %2292 = vmatpush1.bf16.msra.mxu0 %v2207
      %2293 = vmatprep.subr.bf16.mxu0 0
      %2294 = vmatpush1.bf16.msra.mxu0 %v2206
      %2295 = vmatprep.subr.bf16.mxu0 0
      %2296 = vmatpush1.bf16.msra.mxu0 %v2205
      %2297 = vmatprep.subr.bf16.mxu0 0
      %2298 = vmatpush1.bf16.msra.mxu0 %v2204
      %2299 = vmatprep.subr.bf16.mxu0 0
      %2300 = vmatpush1.bf16.msra.mxu0 %v2203
      %2301 = vmatprep.subr.bf16.mxu0 0
      %2302 = vmatpush1.bf16.msra.mxu0 %v2202
      %2303 = vmatprep.subr.bf16.mxu0 0
      %2304 = vmatpush1.bf16.msra.mxu0 %v2201
      %2305 = vmatprep.subr.bf16.mxu0 0
      %2306 = vmatpush2.bf16.msra.mxu0 %v2216
      %2307 = vmatprep.subr.bf16.mxu0 0
      %2308 = vmatpush2.bf16.msra.mxu0 %v2215
      %2309 = vmatprep.subr.bf16.mxu0 0
      %2310 = vmatpush2.bf16.msra.mxu0 %v2214
      %2311 = vmatprep.subr.bf16.mxu0 0
      %2312 = vmatpush2.bf16.msra.mxu0 %v2213
      %2313 = vmatprep.subr.bf16.mxu0 0
      %2314 = vmatpush2.bf16.msra.mxu0 %v2212
      %2315 = vmatprep.subr.bf16.mxu0 0
      %2316 = vmatpush2.bf16.msra.mxu0 %v2211
      %2317 = vmatprep.subr.bf16.mxu0 0
      %2318 = vmatpush2.bf16.msra.mxu0 %v2210
      %2319 = vmatprep.subr.bf16.mxu0 0
      %2320 = vmatpush2.bf16.msra.mxu0 %v2209
      %2321 = vmatprep.mubr.bf16.mxu0 %v1982
      %2322 = vmatmul.mubr.bf16.gmra.mxu0 %v1981
      %v2323 = vpop.f32.mrf.mxu0
      %v2324 = vadd.f32 %v2284, %v2323
      %v2325 = vpop.f32.mrf.mxu0
      %v2326 = vpop.f32.mrf.mxu0
      %v2327 = vpop.f32.mrf.mxu0
      %2328 = vdwg.mxu0
      %v2329 = vsub.f32 0.0, %v2324
      %v2330 = vmul.f32 %v2329, 1.442695
      %v2331 = vpow.pop %v2330
      %v2332 = vadd.f32 %v2331, 1.0
      %v2333 = vrcp.pop %v2332
      %vm2334 = vcmask 64512
      %2335 = vst.msk [vmem:[#allocation7] sm:$0xff] %vm2334, %v2333
    $region33: #{tpu_custom_call.1} parent=1 // pred_fallthru
      _
    // Predicated region
    $region34: #{tpu_custom_call.1} parent=1 // pred_check
      _
    $region35: #{tpu_custom_call.1} parent=1 // pred_check_branch
      %2337 = sbr.rel (0) target = $region37
    $region36: #{tpu_custom_call.1} parent=1 // pred_region
      %s2339 = ssub.s32 128, 128
      %2340 = vsyncadd [#allocation6], %s2339
      %s2342 = sshll.u32 [#allocation7], 4
      %s2343 = int_to_ptr.vmem [resolvable:$true] %s2342
      %2345 = dma.vmem_to_hbm [thread:$0]  %s2343, 128, %s5, [#allocation6]
    $region37: #{tpu_custom_call.1} parent=1 // pred_fallthru
      _
    // Predicated region
    $region38: #{tpu_custom_call.1} parent=1 // pred_check
      _
    $region39: #{tpu_custom_call.1} parent=1 // pred_check_branch
      %2347 = sbr.rel (0) target = $region41
    $region40: #{tpu_custom_call.1} parent=1 // pred_region
      %2348 = dma.done [#allocation6], 128
    $region41: #{tpu_custom_call.1} parent=1 // pred_fallthru
      _
    %2349 = vsyncpa [#allocation5], 1
    %2350 = vsyncpa [#allocation6], 1

</llo_original>
